<compile_context>
chip_gen: v7x
topology: tpu7x:2x2x1
jax: 0.10.0
libtpu: 0.0.40
codegen_flags: <defaults>
</compile_context>

<pallas_src>
import jax
import jax.numpy as jnp
from jax.experimental import pallas as pl
from jax.experimental.pallas import tpu as pltpu


def _cdiv(a, b):
    return -(-a // b)


def _round_up(v, m):
    return _cdiv(v, m) * m


# --------------------------------------------------------------------------- #
# Kernels
# --------------------------------------------------------------------------- #
def _fair_kernel_resident(x_ref, w_ref, mask_ref, o_ref):
    """1-D row-tiled grid; full W resident in VMEM."""
    x = x_ref[...]                                    # (TM, dim_pad)
    m = mask_ref[...]                                 # (TM, 1) int32
    y = jnp.dot(x, w_ref[...],
                preferred_element_type=jnp.float32,
                precision=jax.lax.Precision.HIGHEST).astype(x.dtype)
    o_ref[...] = jnp.where(m > 0, y, x)


def _fair_kernel_coltiled(x_ref, w_ref, mask_ref, o_ref):
    """2-D grid (row tiles, W column tiles); x tile resident across columns."""
    tn = o_ref.shape[-1]
    j = pl.program_id(1)
    x = x_ref[...]                                    # (TM, dim_pad)
    m = mask_ref[...]                                 # (TM, 1) int32
    y = jnp.dot(x, w_ref[...],                        # (dim_pad, TN)
                preferred_element_type=jnp.float32,
                precision=jax.lax.Precision.HIGHEST).astype(x.dtype)
    col0 = pl.multiple_of(j * tn, 128)
    o_ref[...] = jnp.where(m > 0, y, x_ref[:, pl.ds(col0, tn)])


# --------------------------------------------------------------------------- #
# Tiling / VMEM sizing helpers
# --------------------------------------------------------------------------- #
def _vmem_capacity_bytes():
    try:
        cap = getattr(pltpu.get_tpu_info(), "vmem_capacity_bytes", None)
        if cap:
            return int(cap)
    except Exception:
        pass
    return 64 * 1024 * 1024          # conservative fallback (v7x-sized)


def _choose_tn(dim_pad, w_bytes, budget_bytes):
    """Column tile for streamed W (double-buffered): multiple of 128 dividing dim_pad."""
    tn = max(128, (min(dim_pad, 512) // 128) * 128)
    while tn > 128 and (dim_pad % tn != 0
                        or 2 * dim_pad * tn * w_bytes > budget_bytes // 2):
        tn -= 128
    return tn


def _choose_tm(n, dim_pad, tn, x_bytes, w_vmem_bytes, budget_bytes):
    """Row tile: largest multiple of 8 whose working set fits the budget, then
    shrunk so row-padding waste is < 8 rows (>= 2 tiles for large inputs)."""
    tm_cap = 2048 if dim_pad <= 512 else 512

    def vmem(tm_):
        per_step = tm_ * dim_pad * x_bytes        # x tile
        per_step += tm_ * tn * x_bytes            # out tile
        per_step += tm_ * 128 * 4                 # mask tile (lane-padded)
        return 2 * per_step + w_vmem_bytes        # x/out/mask double-buffered

    tm = tm_cap
    while tm > 8 and vmem(tm) > budget_bytes:
        tm -= 256 if tm > 256 else 8
    tm = max(tm, 8)

    # Bound row-padding waste without changing the tile count; keep >= 2 row
    # tiles for large inputs so both v7x TensorCores get work.
    n_tiles = max(_cdiv(n, tm), 2 if n >= 1024 else 1)
    tm = min(tm, _round_up(_cdiv(n, n_tiles), 8))
    return max(tm, 8)


# --------------------------------------------------------------------------- #
# Wrapper
# --------------------------------------------------------------------------- #
def fair_layer_forward(x, deletion_weight, mask=None, *, vmem_budget_bytes=None):
    """Pallas implementation of FairLayer.forward.

    x:               (N, dim) float32
    deletion_weight: (dim, dim) float32
    mask:            (N,) bool, or None -> identity (matches the module when
                     both the call-site mask and self.mask are None)
    """
    if mask is None:
        return x

    n, dim = x.shape
    x_bytes = jnp.dtype(x.dtype).itemsize
    w_bytes = jnp.dtype(deletion_weight.dtype).itemsize

    cap = _vmem_capacity_bytes()
    budget = (vmem_budget_bytes if vmem_budget_bytes is not None
              else min(cap // 2, 64 * 1024 * 1024))
    vmem_limit = min(int(cap * 0.85), 112 * 1024 * 1024)

    # Lane-dense feature dimension (multiple of 128).
    dim_pad = _round_up(dim, 128)

    # Keep W fully resident when it fits half the budget; otherwise stream it
    # column-tiled (key for v7x's 64 MiB VMEM once dim >= ~2048 f32).
    w_resident_bytes = dim_pad * dim_pad * w_bytes
    use_resident_w = w_resident_bytes <= budget // 2
    if use_resident_w:
        tn = dim_pad
        w_vmem_bytes = w_resident_bytes               # single buffer (Buffered(1))
    else:
        tn = _choose_tn(dim_pad, w_bytes, budget)
        w_vmem_bytes = 2 * dim_pad * tn * w_bytes     # streamed, double-buffered

    tm = _choose_tm(n, dim_pad, tn, x_bytes, w_vmem_bytes, budget)
    n_pad = _round_up(n, tm)

    # Zero-pad only when needed (the pad + final slice are extra HBM passes on a
    # memory-bound kernel). Zero x columns / zero W rows keep y[:, :dim] exact;
    # padded rows carry mask=0 (passthrough of zeros) and are sliced off.
    x_p = x
    if (n_pad, dim_pad) != (n, dim):
        x_p = jnp.pad(x, ((0, n_pad - n), (0, dim_pad - dim)))
    w_p = deletion_weight
    if dim_pad != dim:
        w_p = jnp.pad(deletion_weight, ((0, dim_pad - dim), (0, dim_pad - dim)))
    mask_i32 = mask.astype(jnp.int32).reshape(n, 1)
    mask_p = mask_i32 if n_pad == n else jnp.pad(mask_i32, ((0, n_pad - n), (0, 0)))

    out_shape = jax.ShapeDtypeStruct((n_pad, dim_pad), x.dtype)

    if use_resident_w:
        def call(w_pipeline_mode):
            if w_pipeline_mode is None:
                w_spec = pl.BlockSpec((dim_pad, dim_pad), lambda i: (0, 0))
            else:
                w_spec = pl.BlockSpec((dim_pad, dim_pad), lambda i: (0, 0),
                                      pipeline_mode=w_pipeline_mode)
            return pl.pallas_call(
                _fair_kernel_resident,
                out_shape=out_shape,
                grid_spec=pltpu.PrefetchScalarGridSpec(
                    num_scalar_prefetch=0,
                    grid=(n_pad // tm,),
                    in_specs=[
                        pl.BlockSpec((tm, dim_pad), lambda i: (i, 0)),   # x tile
                        w_spec,                                          # W resident
                        pl.BlockSpec((tm, 1), lambda i: (i, 0)),         # mask tile
                    ],
                    out_specs=pl.BlockSpec((tm, dim_pad), lambda i: (i, 0)),
                ),
                compiler_params=pltpu.CompilerParams(
                    dimension_semantics=("parallel",),
                    vmem_limit_bytes=vmem_limit),
            )(x_p, w_p, mask_p)

        try:
            # Constant index_map -> one buffer suffices; frees dim_pad^2*4 bytes
            # of VMEM so _choose_tm can pick a larger row tile.
            out_p = call(pl.Buffered(1))
        except Exception:
            # Fallback if this jax version rejects a single-buffer pipeline_mode.
            out_p = call(None)
    else:
        # Column-tiled W: grid (row tiles, column tiles); x tile stays resident
        # across the column axis (index_map constant in j), no K accumulator.
        out_p = pl.pallas_call(
            _fair_kernel_coltiled,
            out_shape=out_shape,
            grid_spec=pltpu.PrefetchScalarGridSpec(
                num_scalar_prefetch=0,
                grid=(n_pad // tm, dim_pad // tn),
                in_specs=[
                    pl.BlockSpec((tm, dim_pad), lambda i, j: (i, 0)),   # x (resident over j)
                    pl.BlockSpec((dim_pad, tn), lambda i, j: (0, j)),   # W column tile
                    pl.BlockSpec((tm, 1), lambda i, j: (i, 0)),         # mask tile
                ],
                out_specs=pl.BlockSpec((tm, tn), lambda i, j: (i, j)),
            ),
            compiler_params=pltpu.CompilerParams(
                dimension_semantics=("parallel", "parallel"),
                vmem_limit_bytes=vmem_limit),
        )(x_p, w_p, mask_p)

    if (n_pad, dim_pad) != (n, dim):
        out_p = out_p[:n, :dim]
    return out_p


# --------------------------------------------------------------------------- #
# Self-test
# --------------------------------------------------------------------------- #
if __name__ == "__main__":
    key = jax.random.PRNGKey(0)
    kx, km, kx2, km2 = jax.random.split(key, 4)
    HI = jax.lax.Precision.HIGHEST

    # Case 1: small shapes (N=16, dim=32) -> resident-W, single row-tiled grid.
    N, DIM = 16, 32
    x = jax.random.normal(kx, (N, DIM), dtype=jnp.float32)
    mask = jax.random.uniform(km, (N,)) > 0.5
    w = jnp.ones((DIM, DIM), dtype=jnp.float32) / 1000.0   # module's init
    out = jax.block_until_ready(fair_layer_forward(x, w, mask))
    ref = jnp.where(mask[:, None], jnp.matmul(x, w, precision=HI), x)
    assert out.shape == ref.shape, "shape mismatch vs reference"
    assert jnp.allclose(out, ref, atol=1e-5, rtol=1e-5), "mismatch vs reference"

    # Case 2: force the column-tiled-W path with a tiny budget override
    # (exercises the large-dim / v7x code path at small, fast shapes).
    N2, DIM2 = 24, 256
    x2 = jax.random.normal(kx2, (N2, DIM2), dtype=jnp.float32)
    mask2 = jax.random.uniform(km2, (N2,)) > 0.5
    w2 = jnp.ones((DIM2, DIM2), dtype=jnp.float32) / 1000.0
    out2 = jax.block_until_ready(
        fair_layer_forward(x2, w2, mask2, vmem_budget_bytes=256 * 1024))
    ref2 = jnp.where(mask2[:, None], jnp.matmul(x2, w2, precision=HI), x2)
    assert jnp.allclose(out2, ref2, atol=1e-4, rtol=1e-4), "col-tiled path mismatch"

    # mask=None path: identity, as in the module.
    out_none = fair_layer_forward(x, w, None)
    assert jnp.allclose(out_none, x), "mask=None path mismatch"

    print("KERNEL_OK")
</pallas_src>

<mosaic_0001>
module attributes {stable_mosaic.version = 11 : i64} {
  func.func @_fair_kernel_resident(%arg0: i32, %arg1: memref<16x128xf32, #tpu.memory_space<vmem>>, %arg2: memref<128x128xf32, #tpu.memory_space<vmem>>, %arg3: memref<16x1xi32, #tpu.memory_space<vmem>>, %arg4: memref<16x128xf32, #tpu.memory_space<vmem>>) attributes {dimension_semantics = [#tpu.dimension_semantics<parallel>], iteration_bounds = array<i64: 1>, scalar_prefetch = 0 : i64, scratch_operands = 0 : i64, tpu.core_type = #tpu.core_type<tc>, window_params = [{transform_indices = @transform_0, window_bounds = array<i64: 16, 128>}, {pipeline_mode = #tpu.pipeline_mode<synchronous>, transform_indices = @transform_1, window_bounds = array<i64: 128, 128>}, {transform_indices = @transform_2, window_bounds = array<i64: 16, 1>}, {transform_indices = @transform_3, window_bounds = array<i64: 16, 128>}]} {
    %c0 = arith.constant 0 : index
    %c0_0 = arith.constant 0 : index
    %0 = vector.load %arg1[%c0, %c0_0] : memref<16x128xf32, #tpu.memory_space<vmem>>, vector<16x128xf32>
    %c0_1 = arith.constant 0 : index
    %c0_2 = arith.constant 0 : index
    %1 = vector.load %arg3[%c0_1, %c0_2] : memref<16x1xi32, #tpu.memory_space<vmem>>, vector<16x1xi32>
    %c0_3 = arith.constant 0 : index
    %c0_4 = arith.constant 0 : index
    %2 = vector.load %arg2[%c0_3, %c0_4] : memref<128x128xf32, #tpu.memory_space<vmem>>, vector<128x128xf32>
    %cst = arith.constant dense<0.000000e+00> : vector<16x128xf32>
    %3 = tpu.matmul %0, %2, %cst {dimension_numbers = #tpu.dot_dimension_numbers<[1], [0], [0], [1], [0, 0, 1, 1], [], []>, precision = #tpu.contract_precision<fp32>} : vector<16x128xf32>, vector<128x128xf32>, vector<16x128xf32> -> vector<16x128xf32>
    %c0_i32 = arith.constant 0 : i32
    %4 = vector.broadcast %c0_i32 : i32 to vector<16x1xi32>
    %5 = arith.cmpi sgt, %1, %4 : vector<16x1xi32>
    %6 = vector.shape_cast %5 : vector<16x1xi1> to vector<16x1xi1>
    %7 = vector.broadcast %6 : vector<16x1xi1> to vector<16x128xi1>
    %8 = arith.select %7, %3, %0 : vector<16x128xi1>, vector<16x128xf32>
    %c0_5 = arith.constant 0 : index
    %c0_6 = arith.constant 0 : index
    %9 = vector.load %arg4[%c0_5, %c0_6] : memref<16x128xf32, #tpu.memory_space<vmem>>, vector<16x128xf32>
    tpu.vector_store %arg4[%c0_5, %c0_6], %8 {strides = array<i32>} : memref<16x128xf32, #tpu.memory_space<vmem>>, vector<16x128xf32>,
    return
  }
  func.func @transform_0(%arg0: i32) -> (i32, i32) {
    %c0_i32 = arith.constant 0 : i32
    %c0_i32_0 = arith.constant 0 : i32
    return %arg0, %c0_i32 : i32, i32
  }
  func.func @transform_1(%arg0: i32) -> (i32, i32) {
    %c0_i32 = arith.constant 0 : i32
    %c0_i32_0 = arith.constant 0 : i32
    %c0_i32_1 = arith.constant 0 : i32
    return %c0_i32, %c0_i32_0 : i32, i32
  }
  func.func @transform_2(%arg0: i32) -> (i32, i32) {
    %c0_i32 = arith.constant 0 : i32
    %c0_i32_0 = arith.constant 0 : i32
    return %arg0, %c0_i32 : i32, i32
  }
  func.func @transform_3(%arg0: i32) -> (i32, i32) {
    %c0_i32 = arith.constant 0 : i32
    %c0_i32_0 = arith.constant 0 : i32
    return %arg0, %c0_i32 : i32, i32
  }
}

module attributes {stable_mosaic.version = 11 : i64} {
  func.func @_fair_kernel_resident(%arg0: i32, %arg1: memref<16x128xf32, #tpu.memory_space<vmem>>, %arg2: memref<128x128xf32, #tpu.memory_space<vmem>>, %arg3: memref<16x1xi32, #tpu.memory_space<vmem>>, %arg4: memref<16x128xf32, #tpu.memory_space<vmem>>) attributes {dimension_semantics = [#tpu.dimension_semantics<parallel>], iteration_bounds = array<i64: 1>, scalar_prefetch = 0 : i64, scratch_operands = 0 : i64, tpu.core_type = #tpu.core_type<tc>, window_params = [{transform_indices = @transform_0, window_bounds = array<i64: 16, 128>}, {pipeline_mode = #tpu.pipeline_mode<synchronous>, transform_indices = @transform_1, window_bounds = array<i64: 128, 128>}, {transform_indices = @transform_2, window_bounds = array<i64: 16, 1>}, {transform_indices = @transform_3, window_bounds = array<i64: 16, 128>}]} {
    %c0 = arith.constant 0 : index
    %c0_0 = arith.constant 0 : index
    %0 = vector.load %arg1[%c0, %c0_0] : memref<16x128xf32, #tpu.memory_space<vmem>>, vector<16x128xf32>
    %c0_1 = arith.constant 0 : index
    %c0_2 = arith.constant 0 : index
    %1 = vector.load %arg3[%c0_1, %c0_2] : memref<16x1xi32, #tpu.memory_space<vmem>>, vector<16x1xi32>
    %c0_3 = arith.constant 0 : index
    %c0_4 = arith.constant 0 : index
    %2 = vector.load %arg2[%c0_3, %c0_4] : memref<128x128xf32, #tpu.memory_space<vmem>>, vector<128x128xf32>
    %cst = arith.constant dense<0.000000e+00> : vector<16x128xf32>
    %3 = tpu.matmul %0, %2, %cst {dimension_numbers = #tpu.dot_dimension_numbers<[1], [0], [0], [1], [0, 0, 1, 1], [], []>, precision = #tpu.contract_precision<fp32>} : vector<16x128xf32>, vector<128x128xf32>, vector<16x128xf32> -> vector<16x128xf32>
    %c0_i32 = arith.constant 0 : i32
    %4 = vector.broadcast %c0_i32 : i32 to vector<16x1xi32>
    %5 = arith.cmpi sgt, %1, %4 : vector<16x1xi32>
    %6 = vector.shape_cast %5 : vector<16x1xi1> to vector<16x1xi1>
    %7 = vector.broadcast %6 : vector<16x1xi1> to vector<16x128xi1>
    %8 = arith.select %7, %3, %0 : vector<16x128xi1>, vector<16x128xf32>
    %c0_5 = arith.constant 0 : index
    %c0_6 = arith.constant 0 : index
    %9 = vector.load %arg4[%c0_5, %c0_6] : memref<16x128xf32, #tpu.memory_space<vmem>>, vector<16x128xf32>
    tpu.vector_store %arg4[%c0_5, %c0_6], %8 {strides = array<i32>} : memref<16x128xf32, #tpu.memory_space<vmem>>, vector<16x128xf32>,
    return
  }
  func.func @transform_0(%arg0: i32) -> (i32, i32) {
    %c0_i32 = arith.constant 0 : i32
    %c0_i32_0 = arith.constant 0 : i32
    return %arg0, %c0_i32 : i32, i32
  }
  func.func @transform_1(%arg0: i32) -> (i32, i32) {
    %c0_i32 = arith.constant 0 : i32
    %c0_i32_0 = arith.constant 0 : i32
    %c0_i32_1 = arith.constant 0 : i32
    return %c0_i32, %c0_i32_0 : i32, i32
  }
  func.func @transform_2(%arg0: i32) -> (i32, i32) {
    %c0_i32 = arith.constant 0 : i32
    %c0_i32_0 = arith.constant 0 : i32
    return %arg0, %c0_i32 : i32, i32
  }
  func.func @transform_3(%arg0: i32) -> (i32, i32) {
    %c0_i32 = arith.constant 0 : i32
    %c0_i32_0 = arith.constant 0 : i32
    return %arg0, %c0_i32 : i32, i32
  }
}

</mosaic_0001>

<llo_original>
// kernel: tpu_custom_call.1
$region0: #{tpu_custom_call.1}
  #allocation0 [shape = 'u32[]', space=smem, size = 0x4, offset = 0x4, fixed_abs, tag = 'smem constant byte address 0x4 - core index']
  #allocation1 [shape = 'u32[144,128]{1,0:T(1,128)}', space=vmem, size = 0x12000, scoped, tag = 'internal scratch']
  %s0 = inlined_call_operand.vmem [shape: f32[16,128], index: 0, kind: input, shape index: {}]
  %s1 = inlined_call_operand.hbm [shape: f32[128,128], index: 1, kind: input, shape index: {}]
  %s2 = inlined_call_operand.vmem [shape: s32[16,1], index: 2, kind: input, shape index: {}]
  %s3 = inlined_call_operand.hbm [shape: f32[16,128], index: 3, kind: output, shape index: {}]
  %s4 = sld [smem:[#allocation0]]
  $region26: #{tpu_custom_call.1} parent=0
    _
  %s6 = ssub.s32 1, %s4
  %s7 = scalar_select 0, %s6, %s4
  $region1: #{tpu_custom_call.1} parent=0
    #allocation2 [shape = 'u8[65536]{0}', space=vmem, size = 0x10000, scoped, tag = 'input window, operand 1, single buffered']
    #allocation3 [shape = 's32[1]{0}', space=sflag, size = 0x4, scoped, tag = 'scoped memory for tpu_custom_call.1']
    #allocation4 [shape = 's32[1]{0}', space=sflag, size = 0x4, scoped, tag = 'scoped memory for tpu_custom_call.1']
    #allocation5 [shape = 'u8[8192]{0}', space=vmem, size = 0x2000, scoped, tag = 'output window, operand 0, single buffered']
    %8 = vsyncpa [#allocation3], 0
    %9 = vsyncpa [#allocation4], 0
    // Predicated region
    $region2: #{tpu_custom_call.1} parent=1 // pred_check
      _
    $region3: #{tpu_custom_call.1} parent=1 // pred_check_branch
      %11 = sbr.rel (0) target = $region5
    $region4: #{tpu_custom_call.1} parent=1 // pred_region
      _
    $region5: #{tpu_custom_call.1} parent=1 // pred_fallthru
      _
    // Predicated region
    $region6: #{tpu_custom_call.1} parent=1 // pred_check
      _
    $region7: #{tpu_custom_call.1} parent=1 // pred_check_branch
      %13 = sbr.rel (0) target = $region9
    $region8: #{tpu_custom_call.1} parent=1 // pred_region
      %s15 = ssub.s32 2048, 2048
      %16 = vsyncadd [#allocation3], %s15
      %s17 = sshll.u32 [#allocation2], 4
      %s18 = int_to_ptr.vmem [resolvable:$true] %s17
      %23 = dma.hbm_to_vmem [thread:$0]  %s1, 2048, %s18, [#allocation3], 128, 128, 8
    $region9: #{tpu_custom_call.1} parent=1 // pred_fallthru
      _
    // Predicated region
    $region10: #{tpu_custom_call.1} parent=1 // pred_check
      _
    $region11: #{tpu_custom_call.1} parent=1 // pred_check_branch
      %25 = sbr.rel (0) target = $region13
    $region12: #{tpu_custom_call.1} parent=1 // pred_region
      _
    $region13: #{tpu_custom_call.1} parent=1 // pred_fallthru
      _
    // Predicated region
    $region14: #{tpu_custom_call.1} parent=1 // pred_check
      _
    $region15: #{tpu_custom_call.1} parent=1 // pred_check_branch
      %27 = sbr.rel (0) target = $region17
    $region16: #{tpu_custom_call.1} parent=1 // pred_region
      %28 = dma.done [#allocation3], 2048
    $region17: #{tpu_custom_call.1} parent=1 // pred_fallthru
      _
    %v29 = vld [vmem:[%s0] sm:$0xff]
    %v30 = vld [vmem:[%s0 + $0x8] sm:$0xff]
    %v31 = vld [vmem:[%s2] sm:$0xff]
    %v32 = vld [vmem:[%s2 + $0x8] sm:$0xff]
    %v33 = vld [vmem:[#allocation2] sm:$0xff]
    %v34 = vld [vmem:[#allocation2 + $0x8] sm:$0xff]
    %v35 = vld [vmem:[#allocation2 + $0x10] sm:$0xff]
    %v36 = vld [vmem:[#allocation2 + $0x18] sm:$0xff]
    %v37 = vld [vmem:[#allocation2 + $0x20] sm:$0xff]
    %v38 = vld [vmem:[#allocation2 + $0x28] sm:$0xff]
    %v39 = vld [vmem:[#allocation2 + $0x30] sm:$0xff]
    %v40 = vld [vmem:[#allocation2 + $0x38] sm:$0xff]
    %v41 = vld [vmem:[#allocation2 + $0x40] sm:$0xff]
    %v42 = vld [vmem:[#allocation2 + $0x48] sm:$0xff]
    %v43 = vld [vmem:[#allocation2 + $0x50] sm:$0xff]
    %v44 = vld [vmem:[#allocation2 + $0x58] sm:$0xff]
    %v45 = vld [vmem:[#allocation2 + $0x60] sm:$0xff]
    %v46 = vld [vmem:[#allocation2 + $0x68] sm:$0xff]
    %v47 = vld [vmem:[#allocation2 + $0x70] sm:$0xff]
    %v48 = vld [vmem:[#allocation2 + $0x78] sm:$0xff]
    %49 = vmatprep.subr.mxu0 0.0
    %v50 = vand.u32 %v33, 4294901760
    %51 = vmatpush1.msra.mxu0 %v50
    %52 = vmatprep.subr.mxu0 0.0
    %v53 = vand.u32 %v34, 4294901760
    %54 = vmatpush1.msra.mxu0 %v53
    %55 = vmatprep.subr.mxu0 0.0
    %v56 = vand.u32 %v35, 4294901760
    %57 = vmatpush1.msra.mxu0 %v56
    %58 = vmatprep.subr.mxu0 0.0
    %v59 = vand.u32 %v36, 4294901760
    %60 = vmatpush1.msra.mxu0 %v59
    %61 = vmatprep.subr.mxu0 0.0
    %v62 = vand.u32 %v37, 4294901760
    %63 = vmatpush1.msra.mxu0 %v62
    %64 = vmatprep.subr.mxu0 0.0
    %v65 = vand.u32 %v38, 4294901760
    %66 = vmatpush1.msra.mxu0 %v65
    %67 = vmatprep.subr.mxu0 0.0
    %v68 = vand.u32 %v39, 4294901760
    %69 = vmatpush1.msra.mxu0 %v68
    %70 = vmatprep.subr.mxu0 0.0
    %v71 = vand.u32 %v40, 4294901760
    %72 = vmatpush1.msra.mxu0 %v71
    %73 = vmatprep.subr.mxu0 0.0
    %v74 = vand.u32 %v41, 4294901760
    %75 = vmatpush1.msra.mxu0 %v74
    %76 = vmatprep.subr.mxu0 0.0
    %v77 = vand.u32 %v42, 4294901760
    %78 = vmatpush1.msra.mxu0 %v77
    %79 = vmatprep.subr.mxu0 0.0
    %v80 = vand.u32 %v43, 4294901760
    %81 = vmatpush1.msra.mxu0 %v80
    %82 = vmatprep.subr.mxu0 0.0
    %v83 = vand.u32 %v44, 4294901760
    %84 = vmatpush1.msra.mxu0 %v83
    %85 = vmatprep.subr.mxu0 0.0
    %v86 = vand.u32 %v45, 4294901760
    %87 = vmatpush1.msra.mxu0 %v86
    %88 = vmatprep.subr.mxu0 0.0
    %v89 = vand.u32 %v46, 4294901760
    %90 = vmatpush1.msra.mxu0 %v89
    %91 = vmatprep.subr.mxu0 0.0
    %v92 = vand.u32 %v47, 4294901760
    %93 = vmatpush1.msra.mxu0 %v92
    %94 = vmatprep.subr.mxu0 0.0
    %v95 = vand.u32 %v48, 4294901760
    %96 = vmatpush1.msra.mxu0 %v95
    %97 = vmatprep.subr.mxu0 0.0
    %98 = vmatpush1.msra.mxu0 0.0
    %99 = vmatprep.subr.mxu0 0.0
    %100 = vmatpush1.msra.mxu0 0.0
    %101 = vmatprep.subr.mxu0 0.0
    %102 = vmatpush1.msra.mxu0 0.0
    %103 = vmatprep.subr.mxu0 0.0
    %104 = vmatpush1.msra.mxu0 0.0
    %105 = vmatprep.subr.mxu0 0.0
    %106 = vmatpush1.msra.mxu0 0.0
    %107 = vmatprep.subr.mxu0 0.0
    %108 = vmatpush1.msra.mxu0 0.0
    %109 = vmatprep.subr.mxu0 0.0
    %110 = vmatpush1.msra.mxu0 0.0
    %111 = vmatprep.subr.mxu0 0.0
    %112 = vmatpush1.msra.mxu0 0.0
    %113 = vmatprep.subr.mxu0 0.0
    %114 = vmatpush1.msra.mxu0 0.0
    %115 = vmatprep.subr.mxu0 0.0
    %116 = vmatpush1.msra.mxu0 0.0
    %117 = vmatprep.subr.mxu0 0.0
    %118 = vmatpush1.msra.mxu0 0.0
    %119 = vmatprep.subr.mxu0 0.0
    %120 = vmatpush1.msra.mxu0 0.0
    %121 = vmatprep.subr.mxu0 0.0
    %122 = vmatpush1.msra.mxu0 0.0
    %123 = vmatprep.subr.mxu0 0.0
    %124 = vmatpush1.msra.mxu0 0.0
    %125 = vmatprep.subr.mxu0 0.0
    %126 = vmatpush1.msra.mxu0 0.0
    %127 = vmatprep.subr.mxu0 0.0
    %128 = vmatpush1.msra.mxu0 0.0
    %129 = vmatprep.mubr.f32.mxu0 0.0
    %v130 = vand.u32 %v29, 4294901760
    %v131 = vsub.f32 %v29, %v130
    %v132 = vand.u32 %v131, 4294901760
    %v133 = vsub.f32 %v131, %v132
    %v134 = vand.u32 %v133, 4294901760
    %135 = vmatmul.mubr.f32.gmra.mrb[0].mxu0 %v134
    %v136 = vpop.f32.mrb[0].mxu0
    %v137 = vadd.f32 0.0, %v136
    %v138 = vpop.f32.mrb[0].mxu0
    %139 = vmatprep.mubr.f32.mxu0 0.0
    %v140 = vand.u32 %v30, 4294901760
    %v141 = vsub.f32 %v30, %v140
    %v142 = vand.u32 %v141, 4294901760
    %v143 = vsub.f32 %v141, %v142
    %v144 = vand.u32 %v143, 4294901760
    %145 = vmatmul.mubr.f32.gmra.mrb[0].mxu0 %v144
    %v146 = vpop.f32.mrb[0].mxu0
    %v147 = vadd.f32 0.0, %v146
    %v148 = vpop.f32.mrb[0].mxu0
    %149 = vdwg.mxu0
    %150 = vmatprep.subr.mxu0 0.0
    %v151 = vand.u32 %v33, 4294901760
    %v152 = vsub.f32 %v33, %v151
    %v153 = vand.u32 %v152, 4294901760
    %v154 = vsub.f32 %v152, %v153
    %v155 = vand.u32 %v154, 4294901760
    %156 = vmatpush1.msra.mxu0 %v155
    %157 = vmatprep.subr.mxu0 0.0
    %v158 = vand.u32 %v34, 4294901760
    %v159 = vsub.f32 %v34, %v158
    %v160 = vand.u32 %v159, 4294901760
    %v161 = vsub.f32 %v159, %v160
    %v162 = vand.u32 %v161, 4294901760
    %163 = vmatpush1.msra.mxu0 %v162
    %164 = vmatprep.subr.mxu0 0.0
    %v165 = vand.u32 %v35, 4294901760
    %v166 = vsub.f32 %v35, %v165
    %v167 = vand.u32 %v166, 4294901760
    %v168 = vsub.f32 %v166, %v167
    %v169 = vand.u32 %v168, 4294901760
    %170 = vmatpush1.msra.mxu0 %v169
    %171 = vmatprep.subr.mxu0 0.0
    %v172 = vand.u32 %v36, 4294901760
    %v173 = vsub.f32 %v36, %v172
    %v174 = vand.u32 %v173, 4294901760
    %v175 = vsub.f32 %v173, %v174
    %v176 = vand.u32 %v175, 4294901760
    %177 = vmatpush1.msra.mxu0 %v176
    %178 = vmatprep.subr.mxu0 0.0
    %v179 = vand.u32 %v37, 4294901760
    %v180 = vsub.f32 %v37, %v179
    %v181 = vand.u32 %v180, 4294901760
    %v182 = vsub.f32 %v180, %v181
    %v183 = vand.u32 %v182, 4294901760
    %184 = vmatpush1.msra.mxu0 %v183
    %185 = vmatprep.subr.mxu0 0.0
    %v186 = vand.u32 %v38, 4294901760
    %v187 = vsub.f32 %v38, %v186
    %v188 = vand.u32 %v187, 4294901760
    %v189 = vsub.f32 %v187, %v188
    %v190 = vand.u32 %v189, 4294901760
    %191 = vmatpush1.msra.mxu0 %v190
    %192 = vmatprep.subr.mxu0 0.0
    %v193 = vand.u32 %v39, 4294901760
    %v194 = vsub.f32 %v39, %v193
    %v195 = vand.u32 %v194, 4294901760
    %v196 = vsub.f32 %v194, %v195
    %v197 = vand.u32 %v196, 4294901760
    %198 = vmatpush1.msra.mxu0 %v197
    %199 = vmatprep.subr.mxu0 0.0
    %v200 = vand.u32 %v40, 4294901760
    %v201 = vsub.f32 %v40, %v200
    %v202 = vand.u32 %v201, 4294901760
    %v203 = vsub.f32 %v201, %v202
    %v204 = vand.u32 %v203, 4294901760
    %205 = vmatpush1.msra.mxu0 %v204
    %206 = vmatprep.subr.mxu0 0.0
    %v207 = vand.u32 %v41, 4294901760
    %v208 = vsub.f32 %v41, %v207
    %v209 = vand.u32 %v208, 4294901760
    %v210 = vsub.f32 %v208, %v209
    %v211 = vand.u32 %v210, 4294901760
    %212 = vmatpush1.msra.mxu0 %v211
    %213 = vmatprep.subr.mxu0 0.0
    %v214 = vand.u32 %v42, 4294901760
    %v215 = vsub.f32 %v42, %v214
    %v216 = vand.u32 %v215, 4294901760
    %v217 = vsub.f32 %v215, %v216
    %v218 = vand.u32 %v217, 4294901760
    %219 = vmatpush1.msra.mxu0 %v218
    %220 = vmatprep.subr.mxu0 0.0
    %v221 = vand.u32 %v43, 4294901760
    %v222 = vsub.f32 %v43, %v221
    %v223 = vand.u32 %v222, 4294901760
    %v224 = vsub.f32 %v222, %v223
    %v225 = vand.u32 %v224, 4294901760
    %226 = vmatpush1.msra.mxu0 %v225
    %227 = vmatprep.subr.mxu0 0.0
    %v228 = vand.u32 %v44, 4294901760
    %v229 = vsub.f32 %v44, %v228
    %v230 = vand.u32 %v229, 4294901760
    %v231 = vsub.f32 %v229, %v230
    %v232 = vand.u32 %v231, 4294901760
    %233 = vmatpush1.msra.mxu0 %v232
    %234 = vmatprep.subr.mxu0 0.0
    %v235 = vand.u32 %v45, 4294901760
    %v236 = vsub.f32 %v45, %v235
    %v237 = vand.u32 %v236, 4294901760
    %v238 = vsub.f32 %v236, %v237
    %v239 = vand.u32 %v238, 4294901760
    %240 = vmatpush1.msra.mxu0 %v239
    %241 = vmatprep.subr.mxu0 0.0
    %v242 = vand.u32 %v46, 4294901760
    %v243 = vsub.f32 %v46, %v242
    %v244 = vand.u32 %v243, 4294901760
    %v245 = vsub.f32 %v243, %v244
    %v246 = vand.u32 %v245, 4294901760
    %247 = vmatpush1.msra.mxu0 %v246
    %248 = vmatprep.subr.mxu0 0.0
    %v249 = vand.u32 %v47, 4294901760
    %v250 = vsub.f32 %v47, %v249
    %v251 = vand.u32 %v250, 4294901760
    %v252 = vsub.f32 %v250, %v251
    %v253 = vand.u32 %v252, 4294901760
    %254 = vmatpush1.msra.mxu0 %v253
    %255 = vmatprep.subr.mxu0 0.0
    %v256 = vand.u32 %v48, 4294901760
    %v257 = vsub.f32 %v48, %v256
    %v258 = vand.u32 %v257, 4294901760
    %v259 = vsub.f32 %v257, %v258
    %v260 = vand.u32 %v259, 4294901760
    %261 = vmatpush1.msra.mxu0 %v260
    %262 = vmatprep.subr.mxu0 0.0
    %263 = vmatpush1.msra.mxu0 0.0
    %264 = vmatprep.subr.mxu0 0.0
    %265 = vmatpush1.msra.mxu0 0.0
    %266 = vmatprep.subr.mxu0 0.0
    %267 = vmatpush1.msra.mxu0 0.0
    %268 = vmatprep.subr.mxu0 0.0
    %269 = vmatpush1.msra.mxu0 0.0
    %270 = vmatprep.subr.mxu0 0.0
    %271 = vmatpush1.msra.mxu0 0.0
    %272 = vmatprep.subr.mxu0 0.0
    %273 = vmatpush1.msra.mxu0 0.0
    %274 = vmatprep.subr.mxu0 0.0
    %275 = vmatpush1.msra.mxu0 0.0
    %276 = vmatprep.subr.mxu0 0.0
    %277 = vmatpush1.msra.mxu0 0.0
    %278 = vmatprep.subr.mxu0 0.0
    %279 = vmatpush1.msra.mxu0 0.0
    %280 = vmatprep.subr.mxu0 0.0
    %281 = vmatpush1.msra.mxu0 0.0
    %282 = vmatprep.subr.mxu0 0.0
    %283 = vmatpush1.msra.mxu0 0.0
    %284 = vmatprep.subr.mxu0 0.0
    %285 = vmatpush1.msra.mxu0 0.0
    %286 = vmatprep.subr.mxu0 0.0
    %287 = vmatpush1.msra.mxu0 0.0
    %288 = vmatprep.subr.mxu0 0.0
    %289 = vmatpush1.msra.mxu0 0.0
    %290 = vmatprep.subr.mxu0 0.0
    %291 = vmatpush1.msra.mxu0 0.0
    %292 = vmatprep.subr.mxu0 0.0
    %293 = vmatpush1.msra.mxu0 0.0
    %294 = vmatprep.mubr.f32.mxu0 0.0
    %v295 = vand.u32 %v29, 4294901760
    %296 = vmatmul.mubr.f32.gmra.mrb[0].mxu0 %v295
    %v297 = vpop.f32.mrb[0].mxu0
    %v298 = vadd.f32 %v137, %v297
    %v299 = vpop.f32.mrb[0].mxu0
    %300 = vmatprep.mubr.f32.mxu0 0.0
    %v301 = vand.u32 %v30, 4294901760
    %302 = vmatmul.mubr.f32.gmra.mrb[0].mxu0 %v301
    %v303 = vpop.f32.mrb[0].mxu0
    %v304 = vadd.f32 %v147, %v303
    %v305 = vpop.f32.mrb[0].mxu0
    %306 = vdwg.mxu0
    %307 = vmatprep.subr.mxu0 0.0
    %v308 = vand.u32 %v33, 4294901760
    %v309 = vsub.f32 %v33, %v308
    %310 = vmatpush1.msra.mxu0 %v309
    %311 = vmatprep.subr.mxu0 0.0
    %v312 = vand.u32 %v34, 4294901760
    %v313 = vsub.f32 %v34, %v312
    %314 = vmatpush1.msra.mxu0 %v313
    %315 = vmatprep.subr.mxu0 0.0
    %v316 = vand.u32 %v35, 4294901760
    %v317 = vsub.f32 %v35, %v316
    %318 = vmatpush1.msra.mxu0 %v317
    %319 = vmatprep.subr.mxu0 0.0
    %v320 = vand.u32 %v36, 4294901760
    %v321 = vsub.f32 %v36, %v320
    %322 = vmatpush1.msra.mxu0 %v321
    %323 = vmatprep.subr.mxu0 0.0
    %v324 = vand.u32 %v37, 4294901760
    %v325 = vsub.f32 %v37, %v324
    %326 = vmatpush1.msra.mxu0 %v325
    %327 = vmatprep.subr.mxu0 0.0
    %v328 = vand.u32 %v38, 4294901760
    %v329 = vsub.f32 %v38, %v328
    %330 = vmatpush1.msra.mxu0 %v329
    %331 = vmatprep.subr.mxu0 0.0
    %v332 = vand.u32 %v39, 4294901760
    %v333 = vsub.f32 %v39, %v332
    %334 = vmatpush1.msra.mxu0 %v333
    %335 = vmatprep.subr.mxu0 0.0
    %v336 = vand.u32 %v40, 4294901760
    %v337 = vsub.f32 %v40, %v336
    %338 = vmatpush1.msra.mxu0 %v337
    %339 = vmatprep.subr.mxu0 0.0
    %v340 = vand.u32 %v41, 4294901760
    %v341 = vsub.f32 %v41, %v340
    %342 = vmatpush1.msra.mxu0 %v341
    %343 = vmatprep.subr.mxu0 0.0
    %v344 = vand.u32 %v42, 4294901760
    %v345 = vsub.f32 %v42, %v344
    %346 = vmatpush1.msra.mxu0 %v345
    %347 = vmatprep.subr.mxu0 0.0
    %v348 = vand.u32 %v43, 4294901760
    %v349 = vsub.f32 %v43, %v348
    %350 = vmatpush1.msra.mxu0 %v349
    %351 = vmatprep.subr.mxu0 0.0
    %v352 = vand.u32 %v44, 4294901760
    %v353 = vsub.f32 %v44, %v352
    %354 = vmatpush1.msra.mxu0 %v353
    %355 = vmatprep.subr.mxu0 0.0
    %v356 = vand.u32 %v45, 4294901760
    %v357 = vsub.f32 %v45, %v356
    %358 = vmatpush1.msra.mxu0 %v357
    %359 = vmatprep.subr.mxu0 0.0
    %v360 = vand.u32 %v46, 4294901760
    %v361 = vsub.f32 %v46, %v360
    %362 = vmatpush1.msra.mxu0 %v361
    %363 = vmatprep.subr.mxu0 0.0
    %v364 = vand.u32 %v47, 4294901760
    %v365 = vsub.f32 %v47, %v364
    %366 = vmatpush1.msra.mxu0 %v365
    %367 = vmatprep.subr.mxu0 0.0
    %v368 = vand.u32 %v48, 4294901760
    %v369 = vsub.f32 %v48, %v368
    %370 = vmatpush1.msra.mxu0 %v369
    %371 = vmatprep.subr.mxu0 0.0
    %372 = vmatpush1.msra.mxu0 0.0
    %373 = vmatprep.subr.mxu0 0.0
    %374 = vmatpush1.msra.mxu0 0.0
    %375 = vmatprep.subr.mxu0 0.0
    %376 = vmatpush1.msra.mxu0 0.0
    %377 = vmatprep.subr.mxu0 0.0
    %378 = vmatpush1.msra.mxu0 0.0
    %379 = vmatprep.subr.mxu0 0.0
    %380 = vmatpush1.msra.mxu0 0.0
    %381 = vmatprep.subr.mxu0 0.0
    %382 = vmatpush1.msra.mxu0 0.0
    %383 = vmatprep.subr.mxu0 0.0
    %384 = vmatpush1.msra.mxu0 0.0
    %385 = vmatprep.subr.mxu0 0.0
    %386 = vmatpush1.msra.mxu0 0.0
    %387 = vmatprep.subr.mxu0 0.0
    %388 = vmatpush1.msra.mxu0 0.0
    %389 = vmatprep.subr.mxu0 0.0
    %390 = vmatpush1.msra.mxu0 0.0
    %391 = vmatprep.subr.mxu0 0.0
    %392 = vmatpush1.msra.mxu0 0.0
    %393 = vmatprep.subr.mxu0 0.0
    %394 = vmatpush1.msra.mxu0 0.0
    %395 = vmatprep.subr.mxu0 0.0
    %396 = vmatpush1.msra.mxu0 0.0
    %397 = vmatprep.subr.mxu0 0.0
    %398 = vmatpush1.msra.mxu0 0.0
    %399 = vmatprep.subr.mxu0 0.0
    %400 = vmatpush1.msra.mxu0 0.0
    %401 = vmatprep.subr.mxu0 0.0
    %402 = vmatpush1.msra.mxu0 0.0
    %403 = vmatprep.mubr.f32.mxu0 0.0
    %v404 = vand.u32 %v29, 4294901760
    %v405 = vsub.f32 %v29, %v404
    %406 = vmatmul.mubr.f32.gmra.mrb[0].mxu0 %v405
    %v407 = vpop.f32.mrb[0].mxu0
    %v408 = vadd.f32 %v298, %v407
    %v409 = vpop.f32.mrb[0].mxu0
    %410 = vmatprep.mubr.f32.mxu0 0.0
    %v411 = vand.u32 %v30, 4294901760
    %v412 = vsub.f32 %v30, %v411
    %413 = vmatmul.mubr.f32.gmra.mrb[0].mxu0 %v412
    %v414 = vpop.f32.mrb[0].mxu0
    %v415 = vadd.f32 %v304, %v414
    %v416 = vpop.f32.mrb[0].mxu0
    %417 = vdwg.mxu0
    %418 = vmatprep.subr.mxu0 0.0
    %v419 = vand.u32 %v33, 4294901760
    %420 = vmatpush1.msra.mxu0 %v419
    %421 = vmatprep.subr.mxu0 0.0
    %v422 = vand.u32 %v34, 4294901760
    %423 = vmatpush1.msra.mxu0 %v422
    %424 = vmatprep.subr.mxu0 0.0
    %v425 = vand.u32 %v35, 4294901760
    %426 = vmatpush1.msra.mxu0 %v425
    %427 = vmatprep.subr.mxu0 0.0
    %v428 = vand.u32 %v36, 4294901760
    %429 = vmatpush1.msra.mxu0 %v428
    %430 = vmatprep.subr.mxu0 0.0
    %v431 = vand.u32 %v37, 4294901760
    %432 = vmatpush1.msra.mxu0 %v431
    %433 = vmatprep.subr.mxu0 0.0
    %v434 = vand.u32 %v38, 4294901760
    %435 = vmatpush1.msra.mxu0 %v434
    %436 = vmatprep.subr.mxu0 0.0
    %v437 = vand.u32 %v39, 4294901760
    %438 = vmatpush1.msra.mxu0 %v437
    %439 = vmatprep.subr.mxu0 0.0
    %v440 = vand.u32 %v40, 4294901760
    %441 = vmatpush1.msra.mxu0 %v440
    %442 = vmatprep.subr.mxu0 0.0
    %v443 = vand.u32 %v41, 4294901760
    %444 = vmatpush1.msra.mxu0 %v443
    %445 = vmatprep.subr.mxu0 0.0
    %v446 = vand.u32 %v42, 4294901760
    %447 = vmatpush1.msra.mxu0 %v446
    %448 = vmatprep.subr.mxu0 0.0
    %v449 = vand.u32 %v43, 4294901760
    %450 = vmatpush1.msra.mxu0 %v449
    %451 = vmatprep.subr.mxu0 0.0
    %v452 = vand.u32 %v44, 4294901760
    %453 = vmatpush1.msra.mxu0 %v452
    %454 = vmatprep.subr.mxu0 0.0
    %v455 = vand.u32 %v45, 4294901760
    %456 = vmatpush1.msra.mxu0 %v455
    %457 = vmatprep.subr.mxu0 0.0
    %v458 = vand.u32 %v46, 4294901760
    %459 = vmatpush1.msra.mxu0 %v458
    %460 = vmatprep.subr.mxu0 0.0
    %v461 = vand.u32 %v47, 4294901760
    %462 = vmatpush1.msra.mxu0 %v461
    %463 = vmatprep.subr.mxu0 0.0
    %v464 = vand.u32 %v48, 4294901760
    %465 = vmatpush1.msra.mxu0 %v464
    %466 = vmatprep.subr.mxu0 0.0
    %467 = vmatpush1.msra.mxu0 0.0
    %468 = vmatprep.subr.mxu0 0.0
    %469 = vmatpush1.msra.mxu0 0.0
    %470 = vmatprep.subr.mxu0 0.0
    %471 = vmatpush1.msra.mxu0 0.0
    %472 = vmatprep.subr.mxu0 0.0
    %473 = vmatpush1.msra.mxu0 0.0
    %474 = vmatprep.subr.mxu0 0.0
    %475 = vmatpush1.msra.mxu0 0.0
    %476 = vmatprep.subr.mxu0 0.0
    %477 = vmatpush1.msra.mxu0 0.0
    %478 = vmatprep.subr.mxu0 0.0
    %479 = vmatpush1.msra.mxu0 0.0
    %480 = vmatprep.subr.mxu0 0.0
    %481 = vmatpush1.msra.mxu0 0.0
    %482 = vmatprep.subr.mxu0 0.0
    %483 = vmatpush1.msra.mxu0 0.0
    %484 = vmatprep.subr.mxu0 0.0
    %485 = vmatpush1.msra.mxu0 0.0
    %486 = vmatprep.subr.mxu0 0.0
    %487 = vmatpush1.msra.mxu0 0.0
    %488 = vmatprep.subr.mxu0 0.0
    %489 = vmatpush1.msra.mxu0 0.0
    %490 = vmatprep.subr.mxu0 0.0
    %491 = vmatpush1.msra.mxu0 0.0
    %492 = vmatprep.subr.mxu0 0.0
    %493 = vmatpush1.msra.mxu0 0.0
    %494 = vmatprep.subr.mxu0 0.0
    %495 = vmatpush1.msra.mxu0 0.0
    %496 = vmatprep.subr.mxu0 0.0
    %497 = vmatpush1.msra.mxu0 0.0
    %498 = vmatprep.mubr.f32.mxu0 0.0
    %v499 = vand.u32 %v29, 4294901760
    %v500 = vsub.f32 %v29, %v499
    %v501 = vand.u32 %v500, 4294901760
    %502 = vmatmul.mubr.f32.gmra.mrb[0].mxu0 %v501
    %v503 = vpop.f32.mrb[0].mxu0
    %v504 = vadd.f32 %v408, %v503
    %v505 = vpop.f32.mrb[0].mxu0
    %506 = vmatprep.mubr.f32.mxu0 0.0
    %v507 = vand.u32 %v30, 4294901760
    %v508 = vsub.f32 %v30, %v507
    %v509 = vand.u32 %v508, 4294901760
    %510 = vmatmul.mubr.f32.gmra.mrb[0].mxu0 %v509
    %v511 = vpop.f32.mrb[0].mxu0
    %v512 = vadd.f32 %v415, %v511
    %v513 = vpop.f32.mrb[0].mxu0
    %514 = vdwg.mxu0
    %515 = vmatprep.subr.mxu0 0.0
    %v516 = vand.u32 %v33, 4294901760
    %v517 = vsub.f32 %v33, %v516
    %v518 = vand.u32 %v517, 4294901760
    %519 = vmatpush1.msra.mxu0 %v518
    %520 = vmatprep.subr.mxu0 0.0
    %v521 = vand.u32 %v34, 4294901760
    %v522 = vsub.f32 %v34, %v521
    %v523 = vand.u32 %v522, 4294901760
    %524 = vmatpush1.msra.mxu0 %v523
    %525 = vmatprep.subr.mxu0 0.0
    %v526 = vand.u32 %v35, 4294901760
    %v527 = vsub.f32 %v35, %v526
    %v528 = vand.u32 %v527, 4294901760
    %529 = vmatpush1.msra.mxu0 %v528
    %530 = vmatprep.subr.mxu0 0.0
    %v531 = vand.u32 %v36, 4294901760
    %v532 = vsub.f32 %v36, %v531
    %v533 = vand.u32 %v532, 4294901760
    %534 = vmatpush1.msra.mxu0 %v533
    %535 = vmatprep.subr.mxu0 0.0
    %v536 = vand.u32 %v37, 4294901760
    %v537 = vsub.f32 %v37, %v536
    %v538 = vand.u32 %v537, 4294901760
    %539 = vmatpush1.msra.mxu0 %v538
    %540 = vmatprep.subr.mxu0 0.0
    %v541 = vand.u32 %v38, 4294901760
    %v542 = vsub.f32 %v38, %v541
    %v543 = vand.u32 %v542, 4294901760
    %544 = vmatpush1.msra.mxu0 %v543
    %545 = vmatprep.subr.mxu0 0.0
    %v546 = vand.u32 %v39, 4294901760
    %v547 = vsub.f32 %v39, %v546
    %v548 = vand.u32 %v547, 4294901760
    %549 = vmatpush1.msra.mxu0 %v548
    %550 = vmatprep.subr.mxu0 0.0
    %v551 = vand.u32 %v40, 4294901760
    %v552 = vsub.f32 %v40, %v551
    %v553 = vand.u32 %v552, 4294901760
    %554 = vmatpush1.msra.mxu0 %v553
    %555 = vmatprep.subr.mxu0 0.0
    %v556 = vand.u32 %v41, 4294901760
    %v557 = vsub.f32 %v41, %v556
    %v558 = vand.u32 %v557, 4294901760
    %559 = vmatpush1.msra.mxu0 %v558
    %560 = vmatprep.subr.mxu0 0.0
    %v561 = vand.u32 %v42, 4294901760
    %v562 = vsub.f32 %v42, %v561
    %v563 = vand.u32 %v562, 4294901760
    %564 = vmatpush1.msra.mxu0 %v563
    %565 = vmatprep.subr.mxu0 0.0
    %v566 = vand.u32 %v43, 4294901760
    %v567 = vsub.f32 %v43, %v566
    %v568 = vand.u32 %v567, 4294901760
    %569 = vmatpush1.msra.mxu0 %v568
    %570 = vmatprep.subr.mxu0 0.0
    %v571 = vand.u32 %v44, 4294901760
    %v572 = vsub.f32 %v44, %v571
    %v573 = vand.u32 %v572, 4294901760
    %574 = vmatpush1.msra.mxu0 %v573
    %575 = vmatprep.subr.mxu0 0.0
    %v576 = vand.u32 %v45, 4294901760
    %v577 = vsub.f32 %v45, %v576
    %v578 = vand.u32 %v577, 4294901760
    %579 = vmatpush1.msra.mxu0 %v578
    %580 = vmatprep.subr.mxu0 0.0
    %v581 = vand.u32 %v46, 4294901760
    %v582 = vsub.f32 %v46, %v581
    %v583 = vand.u32 %v582, 4294901760
    %584 = vmatpush1.msra.mxu0 %v583
    %585 = vmatprep.subr.mxu0 0.0
    %v586 = vand.u32 %v47, 4294901760
    %v587 = vsub.f32 %v47, %v586
    %v588 = vand.u32 %v587, 4294901760
    %589 = vmatpush1.msra.mxu0 %v588
    %590 = vmatprep.subr.mxu0 0.0
    %v591 = vand.u32 %v48, 4294901760
    %v592 = vsub.f32 %v48, %v591
    %v593 = vand.u32 %v592, 4294901760
    %594 = vmatpush1.msra.mxu0 %v593
    %595 = vmatprep.subr.mxu0 0.0
    %596 = vmatpush1.msra.mxu0 0.0
    %597 = vmatprep.subr.mxu0 0.0
    %598 = vmatpush1.msra.mxu0 0.0
    %599 = vmatprep.subr.mxu0 0.0
    %600 = vmatpush1.msra.mxu0 0.0
    %601 = vmatprep.subr.mxu0 0.0
    %602 = vmatpush1.msra.mxu0 0.0
    %603 = vmatprep.subr.mxu0 0.0
    %604 = vmatpush1.msra.mxu0 0.0
    %605 = vmatprep.subr.mxu0 0.0
    %606 = vmatpush1.msra.mxu0 0.0
    %607 = vmatprep.subr.mxu0 0.0
    %608 = vmatpush1.msra.mxu0 0.0
    %609 = vmatprep.subr.mxu0 0.0
    %610 = vmatpush1.msra.mxu0 0.0
    %611 = vmatprep.subr.mxu0 0.0
    %612 = vmatpush1.msra.mxu0 0.0
    %613 = vmatprep.subr.mxu0 0.0
    %614 = vmatpush1.msra.mxu0 0.0
    %615 = vmatprep.subr.mxu0 0.0
    %616 = vmatpush1.msra.mxu0 0.0
    %617 = vmatprep.subr.mxu0 0.0
    %618 = vmatpush1.msra.mxu0 0.0
    %619 = vmatprep.subr.mxu0 0.0
    %620 = vmatpush1.msra.mxu0 0.0
    %621 = vmatprep.subr.mxu0 0.0
    %622 = vmatpush1.msra.mxu0 0.0
    %623 = vmatprep.subr.mxu0 0.0
    %624 = vmatpush1.msra.mxu0 0.0
    %625 = vmatprep.subr.mxu0 0.0
    %626 = vmatpush1.msra.mxu0 0.0
    %627 = vmatprep.mubr.f32.mxu0 0.0
    %v628 = vand.u32 %v29, 4294901760
    %629 = vmatmul.mubr.f32.gmra.mrb[0].mxu0 %v628
    %v630 = vpop.f32.mrb[0].mxu0
    %v631 = vadd.f32 %v504, %v630
    %v632 = vpop.f32.mrb[0].mxu0
    %633 = vmatprep.mubr.f32.mxu0 0.0
    %v634 = vand.u32 %v30, 4294901760
    %635 = vmatmul.mubr.f32.gmra.mrb[0].mxu0 %v634
    %v636 = vpop.f32.mrb[0].mxu0
    %v637 = vadd.f32 %v512, %v636
    %v638 = vpop.f32.mrb[0].mxu0
    %639 = vdwg.mxu0
    %640 = vmatprep.subr.mxu0 0.0
    %v641 = vand.u32 %v33, 4294901760
    %642 = vmatpush1.msra.mxu0 %v641
    %643 = vmatprep.subr.mxu0 0.0
    %v644 = vand.u32 %v34, 4294901760
    %645 = vmatpush1.msra.mxu0 %v644
    %646 = vmatprep.subr.mxu0 0.0
    %v647 = vand.u32 %v35, 4294901760
    %648 = vmatpush1.msra.mxu0 %v647
    %649 = vmatprep.subr.mxu0 0.0
    %v650 = vand.u32 %v36, 4294901760
    %651 = vmatpush1.msra.mxu0 %v650
    %652 = vmatprep.subr.mxu0 0.0
    %v653 = vand.u32 %v37, 4294901760
    %654 = vmatpush1.msra.mxu0 %v653
    %655 = vmatprep.subr.mxu0 0.0
    %v656 = vand.u32 %v38, 4294901760
    %657 = vmatpush1.msra.mxu0 %v656
    %658 = vmatprep.subr.mxu0 0.0
    %v659 = vand.u32 %v39, 4294901760
    %660 = vmatpush1.msra.mxu0 %v659
    %661 = vmatprep.subr.mxu0 0.0
    %v662 = vand.u32 %v40, 4294901760
    %663 = vmatpush1.msra.mxu0 %v662
    %664 = vmatprep.subr.mxu0 0.0
    %v665 = vand.u32 %v41, 4294901760
    %666 = vmatpush1.msra.mxu0 %v665
    %667 = vmatprep.subr.mxu0 0.0
    %v668 = vand.u32 %v42, 4294901760
    %669 = vmatpush1.msra.mxu0 %v668
    %670 = vmatprep.subr.mxu0 0.0
    %v671 = vand.u32 %v43, 4294901760
    %672 = vmatpush1.msra.mxu0 %v671
    %673 = vmatprep.subr.mxu0 0.0
    %v674 = vand.u32 %v44, 4294901760
    %675 = vmatpush1.msra.mxu0 %v674
    %676 = vmatprep.subr.mxu0 0.0
    %v677 = vand.u32 %v45, 4294901760
    %678 = vmatpush1.msra.mxu0 %v677
    %679 = vmatprep.subr.mxu0 0.0
    %v680 = vand.u32 %v46, 4294901760
    %681 = vmatpush1.msra.mxu0 %v680
    %682 = vmatprep.subr.mxu0 0.0
    %v683 = vand.u32 %v47, 4294901760
    %684 = vmatpush1.msra.mxu0 %v683
    %685 = vmatprep.subr.mxu0 0.0
    %v686 = vand.u32 %v48, 4294901760
    %687 = vmatpush1.msra.mxu0 %v686
    %688 = vmatprep.subr.mxu0 0.0
    %689 = vmatpush1.msra.mxu0 0.0
    %690 = vmatprep.subr.mxu0 0.0
    %691 = vmatpush1.msra.mxu0 0.0
    %692 = vmatprep.subr.mxu0 0.0
    %693 = vmatpush1.msra.mxu0 0.0
    %694 = vmatprep.subr.mxu0 0.0
    %695 = vmatpush1.msra.mxu0 0.0
    %696 = vmatprep.subr.mxu0 0.0
    %697 = vmatpush1.msra.mxu0 0.0
    %698 = vmatprep.subr.mxu0 0.0
    %699 = vmatpush1.msra.mxu0 0.0
    %700 = vmatprep.subr.mxu0 0.0
    %701 = vmatpush1.msra.mxu0 0.0
    %702 = vmatprep.subr.mxu0 0.0
    %703 = vmatpush1.msra.mxu0 0.0
    %704 = vmatprep.subr.mxu0 0.0
    %705 = vmatpush1.msra.mxu0 0.0
    %706 = vmatprep.subr.mxu0 0.0
    %707 = vmatpush1.msra.mxu0 0.0
    %708 = vmatprep.subr.mxu0 0.0
    %709 = vmatpush1.msra.mxu0 0.0
    %710 = vmatprep.subr.mxu0 0.0
    %711 = vmatpush1.msra.mxu0 0.0
    %712 = vmatprep.subr.mxu0 0.0
    %713 = vmatpush1.msra.mxu0 0.0
    %714 = vmatprep.subr.mxu0 0.0
    %715 = vmatpush1.msra.mxu0 0.0
    %716 = vmatprep.subr.mxu0 0.0
    %717 = vmatpush1.msra.mxu0 0.0
    %718 = vmatprep.subr.mxu0 0.0
    %719 = vmatpush1.msra.mxu0 0.0
    %720 = vmatprep.mubr.f32.mxu0 0.0
    %v721 = vand.u32 %v29, 4294901760
    %722 = vmatmul.mubr.f32.gmra.mrb[0].mxu0 %v721
    %v723 = vpop.f32.mrb[0].mxu0
    %v724 = vadd.f32 %v631, %v723
    %v725 = vpop.f32.mrb[0].mxu0
    %726 = vmatprep.mubr.f32.mxu0 0.0
    %v727 = vand.u32 %v30, 4294901760
    %728 = vmatmul.mubr.f32.gmra.mrb[0].mxu0 %v727
    %v729 = vpop.f32.mrb[0].mxu0
    %v730 = vadd.f32 %v637, %v729
    %v731 = vpop.f32.mrb[0].mxu0
    %732 = vdwg.mxu0
    %vm733 = vcmp.gt.s32.totalorder %v31, 0
    %vm734 = vcmp.gt.s32.totalorder %v32, 0
    %v735 = vsel %vm733, 1, 0
    %v736 = vsel %vm734, 1, 0
    %737 = vset.pattern.permute.xlu0 0
    %738 = vperm.xlu0 %737, %v735
    %v739 = vpop.permute.xlu0 %738
    %740 = vset.pattern.permute.xlu0 0
    %741 = vperm.xlu0 %740, %v736
    %v742 = vpop.permute.xlu0 %741
    %vm743 = vcmp.eq.s32.totalorder %v739, 1
    %vm744 = vcmp.eq.s32.totalorder %v742, 1
    %v745 = vsel %vm743, %v724, %v29
    %v746 = vsel %vm744, %v730, %v30
    %747 = vst [vmem:[#allocation5] sm:$0xff] %v745
    %748 = vst [vmem:[#allocation5 + $0x8] sm:$0xff] %v746
    // Predicated region
    $region18: #{tpu_custom_call.1} parent=1 // pred_check
      _
    $region19: #{tpu_custom_call.1} parent=1 // pred_check_branch
      %750 = sbr.rel (0) target = $region21
    $region20: #{tpu_custom_call.1} parent=1 // pred_region
      %s752 = ssub.s32 256, 256
      %753 = vsyncadd [#allocation4], %s752
      %s754 = sshll.u32 [#allocation5], 4
      %s755 = int_to_ptr.vmem [resolvable:$true] %s754
      %760 = dma.vmem_to_hbm [thread:$0]  %s755, 256, %s3, [#allocation4], 128, 128, 8
    $region21: #{tpu_custom_call.1} parent=1 // pred_fallthru
      _
    // Predicated region
    $region22: #{tpu_custom_call.1} parent=1 // pred_check
      _
    $region23: #{tpu_custom_call.1} parent=1 // pred_check_branch
      %762 = sbr.rel (0) target = $region25
    $region24: #{tpu_custom_call.1} parent=1 // pred_region
      %763 = dma.done [#allocation4], 256
    $region25: #{tpu_custom_call.1} parent=1 // pred_fallthru
      _
    %764 = vsyncpa [#allocation3], 1
    %765 = vsyncpa [#allocation4], 1

// kernel: tpu_custom_call.1
$region0: #{tpu_custom_call.1}
  #allocation0 [shape = 'u32[]', space=smem, size = 0x4, offset = 0x4, fixed_abs, tag = 'smem constant byte address 0x4 - core index']
  #allocation1 [shape = 'u32[144,128]{1,0:T(1,128)}', space=vmem, size = 0x12000, scoped, tag = 'internal scratch']
  %s0 = inlined_call_operand.vmem [shape: f32[16,128], index: 0, kind: input, shape index: {}]
  %s1 = inlined_call_operand.hbm [shape: f32[128,128], index: 1, kind: input, shape index: {}]
  %s2 = inlined_call_operand.vmem [shape: s32[16,1], index: 2, kind: input, shape index: {}]
  %s3 = inlined_call_operand.hbm [shape: f32[16,128], index: 3, kind: output, shape index: {}]
  %s4 = sld [smem:[#allocation0]]
  $region26: #{tpu_custom_call.1} parent=0
    _
  %s6 = ssub.s32 1, %s4
  %s7 = scalar_select 0, %s6, %s4
  $region1: #{tpu_custom_call.1} parent=0
    #allocation2 [shape = 'u8[65536]{0}', space=vmem, size = 0x10000, scoped, tag = 'input window, operand 1, single buffered']
    #allocation3 [shape = 's32[1]{0}', space=sflag, size = 0x4, scoped, tag = 'scoped memory for tpu_custom_call.1']
    #allocation4 [shape = 's32[1]{0}', space=sflag, size = 0x4, scoped, tag = 'scoped memory for tpu_custom_call.1']
    #allocation5 [shape = 'u8[8192]{0}', space=vmem, size = 0x2000, scoped, tag = 'output window, operand 0, single buffered']
    %8 = vsyncpa [#allocation3], 0
    %9 = vsyncpa [#allocation4], 0
    // Predicated region
    $region2: #{tpu_custom_call.1} parent=1 // pred_check
      _
    $region3: #{tpu_custom_call.1} parent=1 // pred_check_branch
      %11 = sbr.rel (0) target = $region5
    $region4: #{tpu_custom_call.1} parent=1 // pred_region
      _
    $region5: #{tpu_custom_call.1} parent=1 // pred_fallthru
      _
    // Predicated region
    $region6: #{tpu_custom_call.1} parent=1 // pred_check
      _
    $region7: #{tpu_custom_call.1} parent=1 // pred_check_branch
      %13 = sbr.rel (0) target = $region9
    $region8: #{tpu_custom_call.1} parent=1 // pred_region
      %s15 = ssub.s32 2048, 2048
      %16 = vsyncadd [#allocation3], %s15
      %s17 = sshll.u32 [#allocation2], 4
      %s18 = int_to_ptr.vmem [resolvable:$true] %s17
      %23 = dma.hbm_to_vmem [thread:$0]  %s1, 2048, %s18, [#allocation3], 128, 128, 8
    $region9: #{tpu_custom_call.1} parent=1 // pred_fallthru
      _
    // Predicated region
    $region10: #{tpu_custom_call.1} parent=1 // pred_check
      _
    $region11: #{tpu_custom_call.1} parent=1 // pred_check_branch
      %25 = sbr.rel (0) target = $region13
    $region12: #{tpu_custom_call.1} parent=1 // pred_region
      _
    $region13: #{tpu_custom_call.1} parent=1 // pred_fallthru
      _
    // Predicated region
    $region14: #{tpu_custom_call.1} parent=1 // pred_check
      _
    $region15: #{tpu_custom_call.1} parent=1 // pred_check_branch
      %27 = sbr.rel (0) target = $region17
    $region16: #{tpu_custom_call.1} parent=1 // pred_region
      %28 = dma.done [#allocation3], 2048
    $region17: #{tpu_custom_call.1} parent=1 // pred_fallthru
      _
    %v29 = vld [vmem:[%s0] sm:$0xff]
    %v30 = vld [vmem:[%s0 + $0x8] sm:$0xff]
    %v31 = vld [vmem:[%s2] sm:$0xff]
    %v32 = vld [vmem:[%s2 + $0x8] sm:$0xff]
    %v33 = vld [vmem:[#allocation2] sm:$0xff]
    %v34 = vld [vmem:[#allocation2 + $0x8] sm:$0xff]
    %v35 = vld [vmem:[#allocation2 + $0x10] sm:$0xff]
    %v36 = vld [vmem:[#allocation2 + $0x18] sm:$0xff]
    %v37 = vld [vmem:[#allocation2 + $0x20] sm:$0xff]
    %v38 = vld [vmem:[#allocation2 + $0x28] sm:$0xff]
    %v39 = vld [vmem:[#allocation2 + $0x30] sm:$0xff]
    %v40 = vld [vmem:[#allocation2 + $0x38] sm:$0xff]
    %v41 = vld [vmem:[#allocation2 + $0x40] sm:$0xff]
    %v42 = vld [vmem:[#allocation2 + $0x48] sm:$0xff]
    %v43 = vld [vmem:[#allocation2 + $0x50] sm:$0xff]
    %v44 = vld [vmem:[#allocation2 + $0x58] sm:$0xff]
    %v45 = vld [vmem:[#allocation2 + $0x60] sm:$0xff]
    %v46 = vld [vmem:[#allocation2 + $0x68] sm:$0xff]
    %v47 = vld [vmem:[#allocation2 + $0x70] sm:$0xff]
    %v48 = vld [vmem:[#allocation2 + $0x78] sm:$0xff]
    %49 = vmatprep.subr.mxu0 0.0
    %v50 = vand.u32 %v33, 4294901760
    %51 = vmatpush1.msra.mxu0 %v50
    %52 = vmatprep.subr.mxu0 0.0
    %v53 = vand.u32 %v34, 4294901760
    %54 = vmatpush1.msra.mxu0 %v53
    %55 = vmatprep.subr.mxu0 0.0
    %v56 = vand.u32 %v35, 4294901760
    %57 = vmatpush1.msra.mxu0 %v56
    %58 = vmatprep.subr.mxu0 0.0
    %v59 = vand.u32 %v36, 4294901760
    %60 = vmatpush1.msra.mxu0 %v59
    %61 = vmatprep.subr.mxu0 0.0
    %v62 = vand.u32 %v37, 4294901760
    %63 = vmatpush1.msra.mxu0 %v62
    %64 = vmatprep.subr.mxu0 0.0
    %v65 = vand.u32 %v38, 4294901760
    %66 = vmatpush1.msra.mxu0 %v65
    %67 = vmatprep.subr.mxu0 0.0
    %v68 = vand.u32 %v39, 4294901760
    %69 = vmatpush1.msra.mxu0 %v68
    %70 = vmatprep.subr.mxu0 0.0
    %v71 = vand.u32 %v40, 4294901760
    %72 = vmatpush1.msra.mxu0 %v71
    %73 = vmatprep.subr.mxu0 0.0
    %v74 = vand.u32 %v41, 4294901760
    %75 = vmatpush1.msra.mxu0 %v74
    %76 = vmatprep.subr.mxu0 0.0
    %v77 = vand.u32 %v42, 4294901760
    %78 = vmatpush1.msra.mxu0 %v77
    %79 = vmatprep.subr.mxu0 0.0
    %v80 = vand.u32 %v43, 4294901760
    %81 = vmatpush1.msra.mxu0 %v80
    %82 = vmatprep.subr.mxu0 0.0
    %v83 = vand.u32 %v44, 4294901760
    %84 = vmatpush1.msra.mxu0 %v83
    %85 = vmatprep.subr.mxu0 0.0
    %v86 = vand.u32 %v45, 4294901760
    %87 = vmatpush1.msra.mxu0 %v86
    %88 = vmatprep.subr.mxu0 0.0
    %v89 = vand.u32 %v46, 4294901760
    %90 = vmatpush1.msra.mxu0 %v89
    %91 = vmatprep.subr.mxu0 0.0
    %v92 = vand.u32 %v47, 4294901760
    %93 = vmatpush1.msra.mxu0 %v92
    %94 = vmatprep.subr.mxu0 0.0
    %v95 = vand.u32 %v48, 4294901760
    %96 = vmatpush1.msra.mxu0 %v95
    %97 = vmatprep.subr.mxu0 0.0
    %98 = vmatpush1.msra.mxu0 0.0
    %99 = vmatprep.subr.mxu0 0.0
    %100 = vmatpush1.msra.mxu0 0.0
    %101 = vmatprep.subr.mxu0 0.0
    %102 = vmatpush1.msra.mxu0 0.0
    %103 = vmatprep.subr.mxu0 0.0
    %104 = vmatpush1.msra.mxu0 0.0
    %105 = vmatprep.subr.mxu0 0.0
    %106 = vmatpush1.msra.mxu0 0.0
    %107 = vmatprep.subr.mxu0 0.0
    %108 = vmatpush1.msra.mxu0 0.0
    %109 = vmatprep.subr.mxu0 0.0
    %110 = vmatpush1.msra.mxu0 0.0
    %111 = vmatprep.subr.mxu0 0.0
    %112 = vmatpush1.msra.mxu0 0.0
    %113 = vmatprep.subr.mxu0 0.0
    %114 = vmatpush1.msra.mxu0 0.0
    %115 = vmatprep.subr.mxu0 0.0
    %116 = vmatpush1.msra.mxu0 0.0
    %117 = vmatprep.subr.mxu0 0.0
    %118 = vmatpush1.msra.mxu0 0.0
    %119 = vmatprep.subr.mxu0 0.0
    %120 = vmatpush1.msra.mxu0 0.0
    %121 = vmatprep.subr.mxu0 0.0
    %122 = vmatpush1.msra.mxu0 0.0
    %123 = vmatprep.subr.mxu0 0.0
    %124 = vmatpush1.msra.mxu0 0.0
    %125 = vmatprep.subr.mxu0 0.0
    %126 = vmatpush1.msra.mxu0 0.0
    %127 = vmatprep.subr.mxu0 0.0
    %128 = vmatpush1.msra.mxu0 0.0
    %129 = vmatprep.mubr.f32.mxu0 0.0
    %v130 = vand.u32 %v29, 4294901760
    %v131 = vsub.f32 %v29, %v130
    %v132 = vand.u32 %v131, 4294901760
    %v133 = vsub.f32 %v131, %v132
    %v134 = vand.u32 %v133, 4294901760
    %135 = vmatmul.mubr.f32.gmra.mrb[0].mxu0 %v134
    %v136 = vpop.f32.mrb[0].mxu0
    %v137 = vadd.f32 0.0, %v136
    %v138 = vpop.f32.mrb[0].mxu0
    %139 = vmatprep.mubr.f32.mxu0 0.0
    %v140 = vand.u32 %v30, 4294901760
    %v141 = vsub.f32 %v30, %v140
    %v142 = vand.u32 %v141, 4294901760
    %v143 = vsub.f32 %v141, %v142
    %v144 = vand.u32 %v143, 4294901760
    %145 = vmatmul.mubr.f32.gmra.mrb[0].mxu0 %v144
    %v146 = vpop.f32.mrb[0].mxu0
    %v147 = vadd.f32 0.0, %v146
    %v148 = vpop.f32.mrb[0].mxu0
    %149 = vdwg.mxu0
    %150 = vmatprep.subr.mxu0 0.0
    %v151 = vand.u32 %v33, 4294901760
    %v152 = vsub.f32 %v33, %v151
    %v153 = vand.u32 %v152, 4294901760
    %v154 = vsub.f32 %v152, %v153
    %v155 = vand.u32 %v154, 4294901760
    %156 = vmatpush1.msra.mxu0 %v155
    %157 = vmatprep.subr.mxu0 0.0
    %v158 = vand.u32 %v34, 4294901760
    %v159 = vsub.f32 %v34, %v158
    %v160 = vand.u32 %v159, 4294901760
    %v161 = vsub.f32 %v159, %v160
    %v162 = vand.u32 %v161, 4294901760
    %163 = vmatpush1.msra.mxu0 %v162
    %164 = vmatprep.subr.mxu0 0.0
    %v165 = vand.u32 %v35, 4294901760
    %v166 = vsub.f32 %v35, %v165
    %v167 = vand.u32 %v166, 4294901760
    %v168 = vsub.f32 %v166, %v167
    %v169 = vand.u32 %v168, 4294901760
    %170 = vmatpush1.msra.mxu0 %v169
    %171 = vmatprep.subr.mxu0 0.0
    %v172 = vand.u32 %v36, 4294901760
    %v173 = vsub.f32 %v36, %v172
    %v174 = vand.u32 %v173, 4294901760
    %v175 = vsub.f32 %v173, %v174
    %v176 = vand.u32 %v175, 4294901760
    %177 = vmatpush1.msra.mxu0 %v176
    %178 = vmatprep.subr.mxu0 0.0
    %v179 = vand.u32 %v37, 4294901760
    %v180 = vsub.f32 %v37, %v179
    %v181 = vand.u32 %v180, 4294901760
    %v182 = vsub.f32 %v180, %v181
    %v183 = vand.u32 %v182, 4294901760
    %184 = vmatpush1.msra.mxu0 %v183
    %185 = vmatprep.subr.mxu0 0.0
    %v186 = vand.u32 %v38, 4294901760
    %v187 = vsub.f32 %v38, %v186
    %v188 = vand.u32 %v187, 4294901760
    %v189 = vsub.f32 %v187, %v188
    %v190 = vand.u32 %v189, 4294901760
    %191 = vmatpush1.msra.mxu0 %v190
    %192 = vmatprep.subr.mxu0 0.0
    %v193 = vand.u32 %v39, 4294901760
    %v194 = vsub.f32 %v39, %v193
    %v195 = vand.u32 %v194, 4294901760
    %v196 = vsub.f32 %v194, %v195
    %v197 = vand.u32 %v196, 4294901760
    %198 = vmatpush1.msra.mxu0 %v197
    %199 = vmatprep.subr.mxu0 0.0
    %v200 = vand.u32 %v40, 4294901760
    %v201 = vsub.f32 %v40, %v200
    %v202 = vand.u32 %v201, 4294901760
    %v203 = vsub.f32 %v201, %v202
    %v204 = vand.u32 %v203, 4294901760
    %205 = vmatpush1.msra.mxu0 %v204
    %206 = vmatprep.subr.mxu0 0.0
    %v207 = vand.u32 %v41, 4294901760
    %v208 = vsub.f32 %v41, %v207
    %v209 = vand.u32 %v208, 4294901760
    %v210 = vsub.f32 %v208, %v209
    %v211 = vand.u32 %v210, 4294901760
    %212 = vmatpush1.msra.mxu0 %v211
    %213 = vmatprep.subr.mxu0 0.0
    %v214 = vand.u32 %v42, 4294901760
    %v215 = vsub.f32 %v42, %v214
    %v216 = vand.u32 %v215, 4294901760
    %v217 = vsub.f32 %v215, %v216
    %v218 = vand.u32 %v217, 4294901760
    %219 = vmatpush1.msra.mxu0 %v218
    %220 = vmatprep.subr.mxu0 0.0
    %v221 = vand.u32 %v43, 4294901760
    %v222 = vsub.f32 %v43, %v221
    %v223 = vand.u32 %v222, 4294901760
    %v224 = vsub.f32 %v222, %v223
    %v225 = vand.u32 %v224, 4294901760
    %226 = vmatpush1.msra.mxu0 %v225
    %227 = vmatprep.subr.mxu0 0.0
    %v228 = vand.u32 %v44, 4294901760
    %v229 = vsub.f32 %v44, %v228
    %v230 = vand.u32 %v229, 4294901760
    %v231 = vsub.f32 %v229, %v230
    %v232 = vand.u32 %v231, 4294901760
    %233 = vmatpush1.msra.mxu0 %v232
    %234 = vmatprep.subr.mxu0 0.0
    %v235 = vand.u32 %v45, 4294901760
    %v236 = vsub.f32 %v45, %v235
    %v237 = vand.u32 %v236, 4294901760
    %v238 = vsub.f32 %v236, %v237
    %v239 = vand.u32 %v238, 4294901760
    %240 = vmatpush1.msra.mxu0 %v239
    %241 = vmatprep.subr.mxu0 0.0
    %v242 = vand.u32 %v46, 4294901760
    %v243 = vsub.f32 %v46, %v242
    %v244 = vand.u32 %v243, 4294901760
    %v245 = vsub.f32 %v243, %v244
    %v246 = vand.u32 %v245, 4294901760
    %247 = vmatpush1.msra.mxu0 %v246
    %248 = vmatprep.subr.mxu0 0.0
    %v249 = vand.u32 %v47, 4294901760
    %v250 = vsub.f32 %v47, %v249
    %v251 = vand.u32 %v250, 4294901760
    %v252 = vsub.f32 %v250, %v251
    %v253 = vand.u32 %v252, 4294901760
    %254 = vmatpush1.msra.mxu0 %v253
    %255 = vmatprep.subr.mxu0 0.0
    %v256 = vand.u32 %v48, 4294901760
    %v257 = vsub.f32 %v48, %v256
    %v258 = vand.u32 %v257, 4294901760
    %v259 = vsub.f32 %v257, %v258
    %v260 = vand.u32 %v259, 4294901760
    %261 = vmatpush1.msra.mxu0 %v260
    %262 = vmatprep.subr.mxu0 0.0
    %263 = vmatpush1.msra.mxu0 0.0
    %264 = vmatprep.subr.mxu0 0.0
    %265 = vmatpush1.msra.mxu0 0.0
    %266 = vmatprep.subr.mxu0 0.0
    %267 = vmatpush1.msra.mxu0 0.0
    %268 = vmatprep.subr.mxu0 0.0
    %269 = vmatpush1.msra.mxu0 0.0
    %270 = vmatprep.subr.mxu0 0.0
    %271 = vmatpush1.msra.mxu0 0.0
    %272 = vmatprep.subr.mxu0 0.0
    %273 = vmatpush1.msra.mxu0 0.0
    %274 = vmatprep.subr.mxu0 0.0
    %275 = vmatpush1.msra.mxu0 0.0
    %276 = vmatprep.subr.mxu0 0.0
    %277 = vmatpush1.msra.mxu0 0.0
    %278 = vmatprep.subr.mxu0 0.0
    %279 = vmatpush1.msra.mxu0 0.0
    %280 = vmatprep.subr.mxu0 0.0
    %281 = vmatpush1.msra.mxu0 0.0
    %282 = vmatprep.subr.mxu0 0.0
    %283 = vmatpush1.msra.mxu0 0.0
    %284 = vmatprep.subr.mxu0 0.0
    %285 = vmatpush1.msra.mxu0 0.0
    %286 = vmatprep.subr.mxu0 0.0
    %287 = vmatpush1.msra.mxu0 0.0
    %288 = vmatprep.subr.mxu0 0.0
    %289 = vmatpush1.msra.mxu0 0.0
    %290 = vmatprep.subr.mxu0 0.0
    %291 = vmatpush1.msra.mxu0 0.0
    %292 = vmatprep.subr.mxu0 0.0
    %293 = vmatpush1.msra.mxu0 0.0
    %294 = vmatprep.mubr.f32.mxu0 0.0
    %v295 = vand.u32 %v29, 4294901760
    %296 = vmatmul.mubr.f32.gmra.mrb[0].mxu0 %v295
    %v297 = vpop.f32.mrb[0].mxu0
    %v298 = vadd.f32 %v137, %v297
    %v299 = vpop.f32.mrb[0].mxu0
    %300 = vmatprep.mubr.f32.mxu0 0.0
    %v301 = vand.u32 %v30, 4294901760
    %302 = vmatmul.mubr.f32.gmra.mrb[0].mxu0 %v301
    %v303 = vpop.f32.mrb[0].mxu0
    %v304 = vadd.f32 %v147, %v303
    %v305 = vpop.f32.mrb[0].mxu0
    %306 = vdwg.mxu0
    %307 = vmatprep.subr.mxu0 0.0
    %v308 = vand.u32 %v33, 4294901760
    %v309 = vsub.f32 %v33, %v308
    %310 = vmatpush1.msra.mxu0 %v309
    %311 = vmatprep.subr.mxu0 0.0
    %v312 = vand.u32 %v34, 4294901760
    %v313 = vsub.f32 %v34, %v312
    %314 = vmatpush1.msra.mxu0 %v313
    %315 = vmatprep.subr.mxu0 0.0
    %v316 = vand.u32 %v35, 4294901760
    %v317 = vsub.f32 %v35, %v316
    %318 = vmatpush1.msra.mxu0 %v317
    %319 = vmatprep.subr.mxu0 0.0
    %v320 = vand.u32 %v36, 4294901760
    %v321 = vsub.f32 %v36, %v320
    %322 = vmatpush1.msra.mxu0 %v321
    %323 = vmatprep.subr.mxu0 0.0
    %v324 = vand.u32 %v37, 4294901760
    %v325 = vsub.f32 %v37, %v324
    %326 = vmatpush1.msra.mxu0 %v325
    %327 = vmatprep.subr.mxu0 0.0
    %v328 = vand.u32 %v38, 4294901760
    %v329 = vsub.f32 %v38, %v328
    %330 = vmatpush1.msra.mxu0 %v329
    %331 = vmatprep.subr.mxu0 0.0
    %v332 = vand.u32 %v39, 4294901760
    %v333 = vsub.f32 %v39, %v332
    %334 = vmatpush1.msra.mxu0 %v333
    %335 = vmatprep.subr.mxu0 0.0
    %v336 = vand.u32 %v40, 4294901760
    %v337 = vsub.f32 %v40, %v336
    %338 = vmatpush1.msra.mxu0 %v337
    %339 = vmatprep.subr.mxu0 0.0
    %v340 = vand.u32 %v41, 4294901760
    %v341 = vsub.f32 %v41, %v340
    %342 = vmatpush1.msra.mxu0 %v341
    %343 = vmatprep.subr.mxu0 0.0
    %v344 = vand.u32 %v42, 4294901760
    %v345 = vsub.f32 %v42, %v344
    %346 = vmatpush1.msra.mxu0 %v345
    %347 = vmatprep.subr.mxu0 0.0
    %v348 = vand.u32 %v43, 4294901760
    %v349 = vsub.f32 %v43, %v348
    %350 = vmatpush1.msra.mxu0 %v349
    %351 = vmatprep.subr.mxu0 0.0
    %v352 = vand.u32 %v44, 4294901760
    %v353 = vsub.f32 %v44, %v352
    %354 = vmatpush1.msra.mxu0 %v353
    %355 = vmatprep.subr.mxu0 0.0
    %v356 = vand.u32 %v45, 4294901760
    %v357 = vsub.f32 %v45, %v356
    %358 = vmatpush1.msra.mxu0 %v357
    %359 = vmatprep.subr.mxu0 0.0
    %v360 = vand.u32 %v46, 4294901760
    %v361 = vsub.f32 %v46, %v360
    %362 = vmatpush1.msra.mxu0 %v361
    %363 = vmatprep.subr.mxu0 0.0
    %v364 = vand.u32 %v47, 4294901760
    %v365 = vsub.f32 %v47, %v364
    %366 = vmatpush1.msra.mxu0 %v365
    %367 = vmatprep.subr.mxu0 0.0
    %v368 = vand.u32 %v48, 4294901760
    %v369 = vsub.f32 %v48, %v368
    %370 = vmatpush1.msra.mxu0 %v369
    %371 = vmatprep.subr.mxu0 0.0
    %372 = vmatpush1.msra.mxu0 0.0
    %373 = vmatprep.subr.mxu0 0.0
    %374 = vmatpush1.msra.mxu0 0.0
    %375 = vmatprep.subr.mxu0 0.0
    %376 = vmatpush1.msra.mxu0 0.0
    %377 = vmatprep.subr.mxu0 0.0
    %378 = vmatpush1.msra.mxu0 0.0
    %379 = vmatprep.subr.mxu0 0.0
    %380 = vmatpush1.msra.mxu0 0.0
    %381 = vmatprep.subr.mxu0 0.0
    %382 = vmatpush1.msra.mxu0 0.0
    %383 = vmatprep.subr.mxu0 0.0
    %384 = vmatpush1.msra.mxu0 0.0
    %385 = vmatprep.subr.mxu0 0.0
    %386 = vmatpush1.msra.mxu0 0.0
    %387 = vmatprep.subr.mxu0 0.0
    %388 = vmatpush1.msra.mxu0 0.0
    %389 = vmatprep.subr.mxu0 0.0
    %390 = vmatpush1.msra.mxu0 0.0
    %391 = vmatprep.subr.mxu0 0.0
    %392 = vmatpush1.msra.mxu0 0.0
    %393 = vmatprep.subr.mxu0 0.0
    %394 = vmatpush1.msra.mxu0 0.0
    %395 = vmatprep.subr.mxu0 0.0
    %396 = vmatpush1.msra.mxu0 0.0
    %397 = vmatprep.subr.mxu0 0.0
    %398 = vmatpush1.msra.mxu0 0.0
    %399 = vmatprep.subr.mxu0 0.0
    %400 = vmatpush1.msra.mxu0 0.0
    %401 = vmatprep.subr.mxu0 0.0
    %402 = vmatpush1.msra.mxu0 0.0
    %403 = vmatprep.mubr.f32.mxu0 0.0
    %v404 = vand.u32 %v29, 4294901760
    %v405 = vsub.f32 %v29, %v404
    %406 = vmatmul.mubr.f32.gmra.mrb[0].mxu0 %v405
    %v407 = vpop.f32.mrb[0].mxu0
    %v408 = vadd.f32 %v298, %v407
    %v409 = vpop.f32.mrb[0].mxu0
    %410 = vmatprep.mubr.f32.mxu0 0.0
    %v411 = vand.u32 %v30, 4294901760
    %v412 = vsub.f32 %v30, %v411
    %413 = vmatmul.mubr.f32.gmra.mrb[0].mxu0 %v412
    %v414 = vpop.f32.mrb[0].mxu0
    %v415 = vadd.f32 %v304, %v414
    %v416 = vpop.f32.mrb[0].mxu0
    %417 = vdwg.mxu0
    %418 = vmatprep.subr.mxu0 0.0
    %v419 = vand.u32 %v33, 4294901760
    %420 = vmatpush1.msra.mxu0 %v419
    %421 = vmatprep.subr.mxu0 0.0
    %v422 = vand.u32 %v34, 4294901760
    %423 = vmatpush1.msra.mxu0 %v422
    %424 = vmatprep.subr.mxu0 0.0
    %v425 = vand.u32 %v35, 4294901760
    %426 = vmatpush1.msra.mxu0 %v425
    %427 = vmatprep.subr.mxu0 0.0
    %v428 = vand.u32 %v36, 4294901760
    %429 = vmatpush1.msra.mxu0 %v428
    %430 = vmatprep.subr.mxu0 0.0
    %v431 = vand.u32 %v37, 4294901760
    %432 = vmatpush1.msra.mxu0 %v431
    %433 = vmatprep.subr.mxu0 0.0
    %v434 = vand.u32 %v38, 4294901760
    %435 = vmatpush1.msra.mxu0 %v434
    %436 = vmatprep.subr.mxu0 0.0
    %v437 = vand.u32 %v39, 4294901760
    %438 = vmatpush1.msra.mxu0 %v437
    %439 = vmatprep.subr.mxu0 0.0
    %v440 = vand.u32 %v40, 4294901760
    %441 = vmatpush1.msra.mxu0 %v440
    %442 = vmatprep.subr.mxu0 0.0
    %v443 = vand.u32 %v41, 4294901760
    %444 = vmatpush1.msra.mxu0 %v443
    %445 = vmatprep.subr.mxu0 0.0
    %v446 = vand.u32 %v42, 4294901760
    %447 = vmatpush1.msra.mxu0 %v446
    %448 = vmatprep.subr.mxu0 0.0
    %v449 = vand.u32 %v43, 4294901760
    %450 = vmatpush1.msra.mxu0 %v449
    %451 = vmatprep.subr.mxu0 0.0
    %v452 = vand.u32 %v44, 4294901760
    %453 = vmatpush1.msra.mxu0 %v452
    %454 = vmatprep.subr.mxu0 0.0
    %v455 = vand.u32 %v45, 4294901760
    %456 = vmatpush1.msra.mxu0 %v455
    %457 = vmatprep.subr.mxu0 0.0
    %v458 = vand.u32 %v46, 4294901760
    %459 = vmatpush1.msra.mxu0 %v458
    %460 = vmatprep.subr.mxu0 0.0
    %v461 = vand.u32 %v47, 4294901760
    %462 = vmatpush1.msra.mxu0 %v461
    %463 = vmatprep.subr.mxu0 0.0
    %v464 = vand.u32 %v48, 4294901760
    %465 = vmatpush1.msra.mxu0 %v464
    %466 = vmatprep.subr.mxu0 0.0
    %467 = vmatpush1.msra.mxu0 0.0
    %468 = vmatprep.subr.mxu0 0.0
    %469 = vmatpush1.msra.mxu0 0.0
    %470 = vmatprep.subr.mxu0 0.0
    %471 = vmatpush1.msra.mxu0 0.0
    %472 = vmatprep.subr.mxu0 0.0
    %473 = vmatpush1.msra.mxu0 0.0
    %474 = vmatprep.subr.mxu0 0.0
    %475 = vmatpush1.msra.mxu0 0.0
    %476 = vmatprep.subr.mxu0 0.0
    %477 = vmatpush1.msra.mxu0 0.0
    %478 = vmatprep.subr.mxu0 0.0
    %479 = vmatpush1.msra.mxu0 0.0
    %480 = vmatprep.subr.mxu0 0.0
    %481 = vmatpush1.msra.mxu0 0.0
    %482 = vmatprep.subr.mxu0 0.0
    %483 = vmatpush1.msra.mxu0 0.0
    %484 = vmatprep.subr.mxu0 0.0
    %485 = vmatpush1.msra.mxu0 0.0
    %486 = vmatprep.subr.mxu0 0.0
    %487 = vmatpush1.msra.mxu0 0.0
    %488 = vmatprep.subr.mxu0 0.0
    %489 = vmatpush1.msra.mxu0 0.0
    %490 = vmatprep.subr.mxu0 0.0
    %491 = vmatpush1.msra.mxu0 0.0
    %492 = vmatprep.subr.mxu0 0.0
    %493 = vmatpush1.msra.mxu0 0.0
    %494 = vmatprep.subr.mxu0 0.0
    %495 = vmatpush1.msra.mxu0 0.0
    %496 = vmatprep.subr.mxu0 0.0
    %497 = vmatpush1.msra.mxu0 0.0
    %498 = vmatprep.mubr.f32.mxu0 0.0
    %v499 = vand.u32 %v29, 4294901760
    %v500 = vsub.f32 %v29, %v499
    %v501 = vand.u32 %v500, 4294901760
    %502 = vmatmul.mubr.f32.gmra.mrb[0].mxu0 %v501
    %v503 = vpop.f32.mrb[0].mxu0
    %v504 = vadd.f32 %v408, %v503
    %v505 = vpop.f32.mrb[0].mxu0
    %506 = vmatprep.mubr.f32.mxu0 0.0
    %v507 = vand.u32 %v30, 4294901760
    %v508 = vsub.f32 %v30, %v507
    %v509 = vand.u32 %v508, 4294901760
    %510 = vmatmul.mubr.f32.gmra.mrb[0].mxu0 %v509
    %v511 = vpop.f32.mrb[0].mxu0
    %v512 = vadd.f32 %v415, %v511
    %v513 = vpop.f32.mrb[0].mxu0
    %514 = vdwg.mxu0
    %515 = vmatprep.subr.mxu0 0.0
    %v516 = vand.u32 %v33, 4294901760
    %v517 = vsub.f32 %v33, %v516
    %v518 = vand.u32 %v517, 4294901760
    %519 = vmatpush1.msra.mxu0 %v518
    %520 = vmatprep.subr.mxu0 0.0
    %v521 = vand.u32 %v34, 4294901760
    %v522 = vsub.f32 %v34, %v521
    %v523 = vand.u32 %v522, 4294901760
    %524 = vmatpush1.msra.mxu0 %v523
    %525 = vmatprep.subr.mxu0 0.0
    %v526 = vand.u32 %v35, 4294901760
    %v527 = vsub.f32 %v35, %v526
    %v528 = vand.u32 %v527, 4294901760
    %529 = vmatpush1.msra.mxu0 %v528
    %530 = vmatprep.subr.mxu0 0.0
    %v531 = vand.u32 %v36, 4294901760
    %v532 = vsub.f32 %v36, %v531
    %v533 = vand.u32 %v532, 4294901760
    %534 = vmatpush1.msra.mxu0 %v533
    %535 = vmatprep.subr.mxu0 0.0
    %v536 = vand.u32 %v37, 4294901760
    %v537 = vsub.f32 %v37, %v536
    %v538 = vand.u32 %v537, 4294901760
    %539 = vmatpush1.msra.mxu0 %v538
    %540 = vmatprep.subr.mxu0 0.0
    %v541 = vand.u32 %v38, 4294901760
    %v542 = vsub.f32 %v38, %v541
    %v543 = vand.u32 %v542, 4294901760
    %544 = vmatpush1.msra.mxu0 %v543
    %545 = vmatprep.subr.mxu0 0.0
    %v546 = vand.u32 %v39, 4294901760
    %v547 = vsub.f32 %v39, %v546
    %v548 = vand.u32 %v547, 4294901760
    %549 = vmatpush1.msra.mxu0 %v548
    %550 = vmatprep.subr.mxu0 0.0
    %v551 = vand.u32 %v40, 4294901760
    %v552 = vsub.f32 %v40, %v551
    %v553 = vand.u32 %v552, 4294901760
    %554 = vmatpush1.msra.mxu0 %v553
    %555 = vmatprep.subr.mxu0 0.0
    %v556 = vand.u32 %v41, 4294901760
    %v557 = vsub.f32 %v41, %v556
    %v558 = vand.u32 %v557, 4294901760
    %559 = vmatpush1.msra.mxu0 %v558
    %560 = vmatprep.subr.mxu0 0.0
    %v561 = vand.u32 %v42, 4294901760
    %v562 = vsub.f32 %v42, %v561
    %v563 = vand.u32 %v562, 4294901760
    %564 = vmatpush1.msra.mxu0 %v563
    %565 = vmatprep.subr.mxu0 0.0
    %v566 = vand.u32 %v43, 4294901760
    %v567 = vsub.f32 %v43, %v566
    %v568 = vand.u32 %v567, 4294901760
    %569 = vmatpush1.msra.mxu0 %v568
    %570 = vmatprep.subr.mxu0 0.0
    %v571 = vand.u32 %v44, 4294901760
    %v572 = vsub.f32 %v44, %v571
    %v573 = vand.u32 %v572, 4294901760
    %574 = vmatpush1.msra.mxu0 %v573
    %575 = vmatprep.subr.mxu0 0.0
    %v576 = vand.u32 %v45, 4294901760
    %v577 = vsub.f32 %v45, %v576
    %v578 = vand.u32 %v577, 4294901760
    %579 = vmatpush1.msra.mxu0 %v578
    %580 = vmatprep.subr.mxu0 0.0
    %v581 = vand.u32 %v46, 4294901760
    %v582 = vsub.f32 %v46, %v581
    %v583 = vand.u32 %v582, 4294901760
    %584 = vmatpush1.msra.mxu0 %v583
    %585 = vmatprep.subr.mxu0 0.0
    %v586 = vand.u32 %v47, 4294901760
    %v587 = vsub.f32 %v47, %v586
    %v588 = vand.u32 %v587, 4294901760
    %589 = vmatpush1.msra.mxu0 %v588
    %590 = vmatprep.subr.mxu0 0.0
    %v591 = vand.u32 %v48, 4294901760
    %v592 = vsub.f32 %v48, %v591
    %v593 = vand.u32 %v592, 4294901760
    %594 = vmatpush1.msra.mxu0 %v593
    %595 = vmatprep.subr.mxu0 0.0
    %596 = vmatpush1.msra.mxu0 0.0
    %597 = vmatprep.subr.mxu0 0.0
    %598 = vmatpush1.msra.mxu0 0.0
    %599 = vmatprep.subr.mxu0 0.0
    %600 = vmatpush1.msra.mxu0 0.0
    %601 = vmatprep.subr.mxu0 0.0
    %602 = vmatpush1.msra.mxu0 0.0
    %603 = vmatprep.subr.mxu0 0.0
    %604 = vmatpush1.msra.mxu0 0.0
    %605 = vmatprep.subr.mxu0 0.0
    %606 = vmatpush1.msra.mxu0 0.0
    %607 = vmatprep.subr.mxu0 0.0
    %608 = vmatpush1.msra.mxu0 0.0
    %609 = vmatprep.subr.mxu0 0.0
    %610 = vmatpush1.msra.mxu0 0.0
    %611 = vmatprep.subr.mxu0 0.0
    %612 = vmatpush1.msra.mxu0 0.0
    %613 = vmatprep.subr.mxu0 0.0
    %614 = vmatpush1.msra.mxu0 0.0
    %615 = vmatprep.subr.mxu0 0.0
    %616 = vmatpush1.msra.mxu0 0.0
    %617 = vmatprep.subr.mxu0 0.0
    %618 = vmatpush1.msra.mxu0 0.0
    %619 = vmatprep.subr.mxu0 0.0
    %620 = vmatpush1.msra.mxu0 0.0
    %621 = vmatprep.subr.mxu0 0.0
    %622 = vmatpush1.msra.mxu0 0.0
    %623 = vmatprep.subr.mxu0 0.0
    %624 = vmatpush1.msra.mxu0 0.0
    %625 = vmatprep.subr.mxu0 0.0
    %626 = vmatpush1.msra.mxu0 0.0
    %627 = vmatprep.mubr.f32.mxu0 0.0
    %v628 = vand.u32 %v29, 4294901760
    %629 = vmatmul.mubr.f32.gmra.mrb[0].mxu0 %v628
    %v630 = vpop.f32.mrb[0].mxu0
    %v631 = vadd.f32 %v504, %v630
    %v632 = vpop.f32.mrb[0].mxu0
    %633 = vmatprep.mubr.f32.mxu0 0.0
    %v634 = vand.u32 %v30, 4294901760
    %635 = vmatmul.mubr.f32.gmra.mrb[0].mxu0 %v634
    %v636 = vpop.f32.mrb[0].mxu0
    %v637 = vadd.f32 %v512, %v636
    %v638 = vpop.f32.mrb[0].mxu0
    %639 = vdwg.mxu0
    %640 = vmatprep.subr.mxu0 0.0
    %v641 = vand.u32 %v33, 4294901760
    %642 = vmatpush1.msra.mxu0 %v641
    %643 = vmatprep.subr.mxu0 0.0
    %v644 = vand.u32 %v34, 4294901760
    %645 = vmatpush1.msra.mxu0 %v644
    %646 = vmatprep.subr.mxu0 0.0
    %v647 = vand.u32 %v35, 4294901760
    %648 = vmatpush1.msra.mxu0 %v647
    %649 = vmatprep.subr.mxu0 0.0
    %v650 = vand.u32 %v36, 4294901760
    %651 = vmatpush1.msra.mxu0 %v650
    %652 = vmatprep.subr.mxu0 0.0
    %v653 = vand.u32 %v37, 4294901760
    %654 = vmatpush1.msra.mxu0 %v653
    %655 = vmatprep.subr.mxu0 0.0
    %v656 = vand.u32 %v38, 4294901760
    %657 = vmatpush1.msra.mxu0 %v656
    %658 = vmatprep.subr.mxu0 0.0
    %v659 = vand.u32 %v39, 4294901760
    %660 = vmatpush1.msra.mxu0 %v659
    %661 = vmatprep.subr.mxu0 0.0
    %v662 = vand.u32 %v40, 4294901760
    %663 = vmatpush1.msra.mxu0 %v662
    %664 = vmatprep.subr.mxu0 0.0
    %v665 = vand.u32 %v41, 4294901760
    %666 = vmatpush1.msra.mxu0 %v665
    %667 = vmatprep.subr.mxu0 0.0
    %v668 = vand.u32 %v42, 4294901760
    %669 = vmatpush1.msra.mxu0 %v668
    %670 = vmatprep.subr.mxu0 0.0
    %v671 = vand.u32 %v43, 4294901760
    %672 = vmatpush1.msra.mxu0 %v671
    %673 = vmatprep.subr.mxu0 0.0
    %v674 = vand.u32 %v44, 4294901760
    %675 = vmatpush1.msra.mxu0 %v674
    %676 = vmatprep.subr.mxu0 0.0
    %v677 = vand.u32 %v45, 4294901760
    %678 = vmatpush1.msra.mxu0 %v677
    %679 = vmatprep.subr.mxu0 0.0
    %v680 = vand.u32 %v46, 4294901760
    %681 = vmatpush1.msra.mxu0 %v680
    %682 = vmatprep.subr.mxu0 0.0
    %v683 = vand.u32 %v47, 4294901760
    %684 = vmatpush1.msra.mxu0 %v683
    %685 = vmatprep.subr.mxu0 0.0
    %v686 = vand.u32 %v48, 4294901760
    %687 = vmatpush1.msra.mxu0 %v686
    %688 = vmatprep.subr.mxu0 0.0
    %689 = vmatpush1.msra.mxu0 0.0
    %690 = vmatprep.subr.mxu0 0.0
    %691 = vmatpush1.msra.mxu0 0.0
    %692 = vmatprep.subr.mxu0 0.0
    %693 = vmatpush1.msra.mxu0 0.0
    %694 = vmatprep.subr.mxu0 0.0
    %695 = vmatpush1.msra.mxu0 0.0
    %696 = vmatprep.subr.mxu0 0.0
    %697 = vmatpush1.msra.mxu0 0.0
    %698 = vmatprep.subr.mxu0 0.0
    %699 = vmatpush1.msra.mxu0 0.0
    %700 = vmatprep.subr.mxu0 0.0
    %701 = vmatpush1.msra.mxu0 0.0
    %702 = vmatprep.subr.mxu0 0.0
    %703 = vmatpush1.msra.mxu0 0.0
    %704 = vmatprep.subr.mxu0 0.0
    %705 = vmatpush1.msra.mxu0 0.0
    %706 = vmatprep.subr.mxu0 0.0
    %707 = vmatpush1.msra.mxu0 0.0
    %708 = vmatprep.subr.mxu0 0.0
    %709 = vmatpush1.msra.mxu0 0.0
    %710 = vmatprep.subr.mxu0 0.0
    %711 = vmatpush1.msra.mxu0 0.0
    %712 = vmatprep.subr.mxu0 0.0
    %713 = vmatpush1.msra.mxu0 0.0
    %714 = vmatprep.subr.mxu0 0.0
    %715 = vmatpush1.msra.mxu0 0.0
    %716 = vmatprep.subr.mxu0 0.0
    %717 = vmatpush1.msra.mxu0 0.0
    %718 = vmatprep.subr.mxu0 0.0
    %719 = vmatpush1.msra.mxu0 0.0
    %720 = vmatprep.mubr.f32.mxu0 0.0
    %v721 = vand.u32 %v29, 4294901760
    %722 = vmatmul.mubr.f32.gmra.mrb[0].mxu0 %v721
    %v723 = vpop.f32.mrb[0].mxu0
    %v724 = vadd.f32 %v631, %v723
    %v725 = vpop.f32.mrb[0].mxu0
    %726 = vmatprep.mubr.f32.mxu0 0.0
    %v727 = vand.u32 %v30, 4294901760
    %728 = vmatmul.mubr.f32.gmra.mrb[0].mxu0 %v727
    %v729 = vpop.f32.mrb[0].mxu0
    %v730 = vadd.f32 %v637, %v729
    %v731 = vpop.f32.mrb[0].mxu0
    %732 = vdwg.mxu0
    %vm733 = vcmp.gt.s32.totalorder %v31, 0
    %vm734 = vcmp.gt.s32.totalorder %v32, 0
    %v735 = vsel %vm733, 1, 0
    %v736 = vsel %vm734, 1, 0
    %737 = vset.pattern.permute.xlu0 0
    %738 = vperm.xlu0 %737, %v735
    %v739 = vpop.permute.xlu0 %738
    %740 = vset.pattern.permute.xlu0 0
    %741 = vperm.xlu0 %740, %v736
    %v742 = vpop.permute.xlu0 %741
    %vm743 = vcmp.eq.s32.totalorder %v739, 1
    %vm744 = vcmp.eq.s32.totalorder %v742, 1
    %v745 = vsel %vm743, %v724, %v29
    %v746 = vsel %vm744, %v730, %v30
    %747 = vst [vmem:[#allocation5] sm:$0xff] %v745
    %748 = vst [vmem:[#allocation5 + $0x8] sm:$0xff] %v746
    // Predicated region
    $region18: #{tpu_custom_call.1} parent=1 // pred_check
      _
    $region19: #{tpu_custom_call.1} parent=1 // pred_check_branch
      %750 = sbr.rel (0) target = $region21
    $region20: #{tpu_custom_call.1} parent=1 // pred_region
      %s752 = ssub.s32 256, 256
      %753 = vsyncadd [#allocation4], %s752
      %s754 = sshll.u32 [#allocation5], 4
      %s755 = int_to_ptr.vmem [resolvable:$true] %s754
      %760 = dma.vmem_to_hbm [thread:$0]  %s755, 256, %s3, [#allocation4], 128, 128, 8
    $region21: #{tpu_custom_call.1} parent=1 // pred_fallthru
      _
    // Predicated region
    $region22: #{tpu_custom_call.1} parent=1 // pred_check
      _
    $region23: #{tpu_custom_call.1} parent=1 // pred_check_branch
      %762 = sbr.rel (0) target = $region25
    $region24: #{tpu_custom_call.1} parent=1 // pred_region
      %763 = dma.done [#allocation4], 256
    $region25: #{tpu_custom_call.1} parent=1 // pred_fallthru
      _
    %764 = vsyncpa [#allocation3], 1
    %765 = vsyncpa [#allocation4], 1

</llo_original>
